<compile_context>
chip_gen: v6e
topology: v6e:2x2x1
jax: 0.10.0
libtpu: 0.0.40
codegen_flags: <defaults>
</compile_context>

<pallas_src>
import numpy as np
import jax
import jax.numpy as jnp
from jax import lax
from jax.experimental import pallas as pl
from jax.experimental.pallas import tpu as pltpu


def _round_up(v, m):
    return ((v + m - 1) // m) * m


def make_resblock_kernel(H, W, Cin, Cmid, Cout, Bt, residual, down_rate,
                         matmul_bf16, approx_gelu):
    HW = H * W
    P0 = _round_up(W + 1, 128)                    # lane-aligned head pad (covers -(W+1) tap)
    pad_lanes = _round_up(P0 + HW + W + 1, 128)   # head + interior + tail, lane aligned
    mm_dtype = jnp.bfloat16 if matmul_bf16 else jnp.float32
    SQRT_HALF = np.float32(1.0 / np.sqrt(2.0))

    def _gelu(v):
        if approx_gelu:
            # tanh approximation -> EUP slot (does NOT bit-match torch's erf GELU)
            return jax.nn.gelu(v, approximate=True)
        return 0.5 * v * (1.0 + lax.erf(v * SQRT_HALF))

    def kernel(*refs):
        if down_rate is not None:
            (x_ref, w1_ref, b1_ref, w2_ref, b2_ref, w3_ref, b3_ref,
             w4_ref, b4_ref, pool_ref, o_ref, p_ref) = refs
        else:
            (x_ref, w1_ref, b1_ref, w2_ref, b2_ref, w3_ref, b3_ref,
             w4_ref, b4_ref, o_ref, p_ref) = refs
            pool_ref = None

        # Zero only the two padding strips (per grid step — safe under megacore
        # sharding); the interior is always fully overwritten before it is read.
        p_ref[:, 0:P0] = jnp.zeros((Cmid, P0), jnp.float32)
        p_ref[:, P0 + HW:pad_lanes] = jnp.zeros((Cmid, pad_lanes - P0 - HW),
                                                jnp.float32)

        # Horizontal 3x3-tap masks, broadcast ONCE (JAX does not CSE broadcast_in_dim).
        xcol = lax.broadcasted_iota(jnp.int32, (1, HW), 1) % W
        not_left = jnp.broadcast_to(xcol >= 1, (Cmid, HW))       # valid for dx = -1 tap
        not_right = jnp.broadcast_to(xcol <= W - 2, (Cmid, HW))  # valid for dx = +1 tap

        w1 = w1_ref[...]; w2 = w2_ref[...]; w3 = w3_ref[...]; w4 = w4_ref[...]
        b1 = b1_ref[...]; b2 = b2_ref[...]; b3 = b3_ref[...]; b4 = b4_ref[...]

        def conv3x3(act, w, b):
            # TODO(synk): for production Cmid, accumulate 9 per-tap matmuls instead
            #             of materializing the (9*Cmid, HW) im2col.
            p_ref[:, P0:P0 + HW] = act                         # lane-aligned staging store
            cols = []
            for dy in range(3):
                for dx in range(3):
                    s = P0 + (dy - 1) * W + (dx - 1)
                    t = p_ref[:, s:s + HW]                     # shifted tap (zeros off-image)
                    if dx == 0:
                        t = jnp.where(not_left, t, 0.0)        # kill row-wrap of x-1 tap
                    elif dx == 2:
                        t = jnp.where(not_right, t, 0.0)       # kill row-wrap of x+1 tap
                    cols.append(t)
            col = jnp.concatenate(cols, axis=0).astype(mm_dtype)   # (9*Cmid, HW)
            return jnp.dot(w, col, preferred_element_type=jnp.float32) + b

        # Bt images per grid step (static unrolled loop; scratch is reused serially).
        for bi in range(Bt):
            x = x_ref[bi].astype(jnp.float32)                  # (Cin, HW), upcast on load
            a = jnp.dot(w1, _gelu(x).astype(mm_dtype),
                        preferred_element_type=jnp.float32) + b1      # c1: 1x1
            a = conv3x3(_gelu(a), w2, b2)                             # c2: 3x3
            a = conv3x3(_gelu(a), w3, b3)                             # c3: 3x3
            out = jnp.dot(w4, _gelu(a).astype(mm_dtype),
                          preferred_element_type=jnp.float32) + b4    # c4: 1x1
            if residual:
                out = out + x
            if down_rate is None:
                o_ref[bi] = out.astype(o_ref.dtype)
            else:
                # avg_pool2d(kernel=stride=d) fused as one small MXU matmul against
                # a constant (HW, Ho*Wo) pooling matrix -> decimated in-kernel.
                o_ref[bi] = jnp.dot(out, pool_ref[...],
                                    preferred_element_type=jnp.float32
                                    ).astype(o_ref.dtype)

    return kernel, pad_lanes


def resblock_pallas(x_nchw, params, *, residual, down_rate,
                    matmul_bf16=False, approx_gelu=False):
    """params are PyTorch-shaped: (w1,b1,w2,b2,w3,b3,w4,b4), conv weights OIHW."""
    w1, b1, w2, b2, w3, b3, w4, b4 = params
    B, Cin, H, W = x_nchw.shape
    Cmid = w1.shape[0]
    Cout = w4.shape[0]
    HW = H * W
    d = down_rate if down_rate is not None else 1
    assert H % d == 0 and W % d == 0
    if residual:
        assert Cin == Cout, "residual path requires in_width == out_width"
    Ho, Wo = H // d, W // d
    HWo = Ho * Wo

    # Batch block: largest divisor of B that is <= 8 (amortizes per-step pipeline
    # overhead, larger / more BW-efficient DMAs, still tiny vs. the VMEM budget).
    Bt = 1
    for cand in range(min(B, 8), 0, -1):
        if B % cand == 0:
            Bt = cand
            break

    # Channel-major, spatially flattened (lane-dense) activations.  Free reshape,
    # NO dtype cast: the kernel up-casts on load and writes back in x's dtype.
    x2 = x_nchw.reshape(B, Cin, HW)

    mm_dtype = jnp.bfloat16 if matmul_bf16 else jnp.float32
    w1k = w1[:, :, 0, 0].astype(mm_dtype)                              # (Cmid, Cin)
    w4k = w4[:, :, 0, 0].astype(mm_dtype)                              # (Cout, Cmid)
    # im2col weights: OIHW -> (O, ky, kx, I) -> (O, 9*I); K ordered tap-major to
    # match the in-kernel concat order (tap = dy*3 + dx, then input channel).
    w2k = jnp.transpose(w2, (0, 2, 3, 1)).reshape(Cmid, 9 * Cmid).astype(mm_dtype)
    w3k = jnp.transpose(w3, (0, 2, 3, 1)).reshape(Cmid, 9 * Cmid).astype(mm_dtype)
    b1k = b1.reshape(Cmid, 1).astype(jnp.float32)
    b2k = b2.reshape(Cmid, 1).astype(jnp.float32)
    b3k = b3.reshape(Cmid, 1).astype(jnp.float32)
    b4k = b4.reshape(Cout, 1).astype(jnp.float32)

    kernel, pad_lanes = make_resblock_kernel(H, W, Cin, Cmid, Cout, Bt,
                                             residual, down_rate,
                                             matmul_bf16, approx_gelu)

    def _full(shape):
        nd = len(shape)
        return pl.BlockSpec(shape, lambda b, _nd=nd: (0,) * _nd)

    in_specs = [
        pl.BlockSpec((Bt, Cin, HW), lambda b: (b, 0, 0)),   # x: Bt images per grid step
        _full((Cmid, Cin)), _full((Cmid, 1)),               # c1
        _full((Cmid, 9 * Cmid)), _full((Cmid, 1)),          # c2 (im2col)
        _full((Cmid, 9 * Cmid)), _full((Cmid, 1)),          # c3 (im2col)
        _full((Cout, Cmid)), _full((Cout, 1)),              # c4
    ]
    inputs = [x2, w1k, b1k, w2k, b2k, w3k, b3k, w4k, b4k]

    if down_rate is not None:
        # constant avg-pool matrix: 1/d^2 at (y*W + x, (y//d)*Wo + x//d)
        rows = np.arange(HW)
        cols = (rows // W // d) * Wo + (rows % W) // d
        pool_np = np.zeros((HW, HWo), np.float32)
        pool_np[rows, cols] = 1.0 / (d * d)
        in_specs.append(_full((HW, HWo)))
        inputs.append(jnp.asarray(pool_np))

    out_flat = pl.pallas_call(
        kernel,
        out_shape=jax.ShapeDtypeStruct((B, Cout, HWo), x_nchw.dtype),
        grid=(B // Bt,),
        in_specs=in_specs,
        out_specs=pl.BlockSpec((Bt, Cout, HWo), lambda b: (b, 0, 0)),
        scratch_shapes=[pltpu.VMEM((Cmid, pad_lanes), jnp.float32)],
        compiler_params=pltpu.CompilerParams(
            dimension_semantics=("parallel",),
            # TODO(synk): re-budget for v7x's 64 MiB VMEM when Bt / channels grow.
            vmem_limit_bytes=32 * 1024 * 1024,
        ),
    )(*inputs)

    # Output is already decimated in-kernel; no strided slice needed here.
    return out_flat.reshape(B, Cout, Ho, Wo)


def resblock_ref(x, params, *, residual, down_rate):
    """Pure-JAX reference matching the PyTorch forward (NCHW)."""
    w1, b1, w2, b2, w3, b3, w4, b4 = params

    def conv(h, w, b, pad):
        y = lax.conv_general_dilated(h, w, (1, 1), [(pad, pad), (pad, pad)],
                                     dimension_numbers=('NCHW', 'OIHW', 'NCHW'))
        return y + b.reshape(1, -1, 1, 1)

    g = lambda v: jax.nn.gelu(v, approximate=False)
    h = conv(g(x), w1, b1, 0)
    h = conv(g(h), w2, b2, 1)
    h = conv(g(h), w3, b3, 1)
    h = conv(g(h), w4, b4, 0)
    out = x + h if residual else h
    if down_rate is not None:
        B, C, H, W = out.shape
        d = down_rate
        out = out.reshape(B, C, H // d, d, W // d, d).mean(axis=(3, 5))
    return out


if __name__ == "__main__":
    # ResBlock(in_width=4, middle_width=8, out_width=4, down_rate=2,
    #          residual=True, use_3x3=True, zero_last=False)
    B, Cin, H, W = 2, 4, 16, 16
    Cmid, Cout = 8, 4

    key = jax.random.PRNGKey(0)
    k = jax.random.split(key, 5)
    x = jax.random.normal(k[0], (B, Cin, H, W), jnp.float32)

    # deterministic synthetic weights (PyTorch OIHW shapes); zero_bias=True -> zero biases
    w1 = 0.2 * jax.random.normal(k[1], (Cmid, Cin, 1, 1), jnp.float32)
    w2 = 0.1 * jax.random.normal(k[2], (Cmid, Cmid, 3, 3), jnp.float32)
    w3 = 0.1 * jax.random.normal(k[3], (Cmid, Cmid, 3, 3), jnp.float32)
    w4 = 0.2 * jax.random.normal(k[4], (Cout, Cmid, 1, 1), jnp.float32)
    b1 = jnp.zeros((Cmid,), jnp.float32)
    b2 = jnp.zeros((Cmid,), jnp.float32)
    b3 = jnp.zeros((Cmid,), jnp.float32)
    b4 = jnp.zeros((Cout,), jnp.float32)
    params = (w1, b1, w2, b2, w3, b3, w4, b4)

    # down-rate path (residual + avg_pool2d(2) fused & decimated in-kernel)
    out = resblock_pallas(x, params, residual=True, down_rate=2)
    out = jax.block_until_ready(out)
    ref = resblock_ref(x, params, residual=True, down_rate=2)
    assert out.shape == ref.shape, (out.shape, ref.shape)
    np.testing.assert_allclose(np.asarray(out), np.asarray(ref), rtol=1e-4, atol=1e-4)

    # no-downsample path (exercises the other output branch)
    out2 = resblock_pallas(x, params, residual=True, down_rate=None)
    out2 = jax.block_until_ready(out2)
    ref2 = resblock_ref(x, params, residual=True, down_rate=None)
    assert out2.shape == ref2.shape, (out2.shape, ref2.shape)
    np.testing.assert_allclose(np.asarray(out2), np.asarray(ref2), rtol=1e-4, atol=1e-4)

    print("KERNEL_OK")
</pallas_src>

<mosaic_0001>
module attributes {stable_mosaic.version = 11 : i64} {
  func.func @kernel(%arg0: i32, %arg1: memref<2x4x256xf32, #tpu.memory_space<vmem>>, %arg2: memref<8x4xf32, #tpu.memory_space<vmem>>, %arg3: memref<8x1xf32, #tpu.memory_space<vmem>>, %arg4: memref<8x72xf32, #tpu.memory_space<vmem>>, %arg5: memref<8x1xf32, #tpu.memory_space<vmem>>, %arg6: memref<8x72xf32, #tpu.memory_space<vmem>>, %arg7: memref<8x1xf32, #tpu.memory_space<vmem>>, %arg8: memref<4x8xf32, #tpu.memory_space<vmem>>, %arg9: memref<4x1xf32, #tpu.memory_space<vmem>>, %arg10: memref<256x64xf32, #tpu.memory_space<vmem>>, %arg11: memref<2x4x64xf32, #tpu.memory_space<vmem>>, %arg12: memref<8x512xf32, #tpu.memory_space<vmem>>) attributes {dimension_semantics = [#tpu.dimension_semantics<parallel>], iteration_bounds = array<i64: 1>, scalar_prefetch = 0 : i64, scratch_operands = 1 : i64, tpu.core_type = #tpu.core_type<tc>, window_params = [{transform_indices = @transform_0, window_bounds = array<i64: 2, 4, 256>}, {pipeline_mode = #tpu.pipeline_mode<synchronous>, transform_indices = @transform_1, window_bounds = array<i64: 8, 4>}, {pipeline_mode = #tpu.pipeline_mode<synchronous>, transform_indices = @transform_2, window_bounds = array<i64: 8, 1>}, {pipeline_mode = #tpu.pipeline_mode<synchronous>, transform_indices = @transform_3, window_bounds = array<i64: 8, 72>}, {pipeline_mode = #tpu.pipeline_mode<synchronous>, transform_indices = @transform_4, window_bounds = array<i64: 8, 1>}, {pipeline_mode = #tpu.pipeline_mode<synchronous>, transform_indices = @transform_5, window_bounds = array<i64: 8, 72>}, {pipeline_mode = #tpu.pipeline_mode<synchronous>, transform_indices = @transform_6, window_bounds = array<i64: 8, 1>}, {pipeline_mode = #tpu.pipeline_mode<synchronous>, transform_indices = @transform_7, window_bounds = array<i64: 4, 8>}, {pipeline_mode = #tpu.pipeline_mode<synchronous>, transform_indices = @transform_8, window_bounds = array<i64: 4, 1>}, {pipeline_mode = #tpu.pipeline_mode<synchronous>, transform_indices = @transform_9, window_bounds = array<i64: 256, 64>}, {transform_indices = @transform_10, window_bounds = array<i64: 2, 4, 64>}]} {
    %cst = arith.constant 0.000000e+00 : f32
    %0 = vector.broadcast %cst : f32 to vector<8x128xf32>
    %c0 = arith.constant 0 : index
    %c0_0 = arith.constant 0 : index
    %1 = vector.load %arg12[%c0, %c0_0] : memref<8x512xf32, #tpu.memory_space<vmem>>, vector<8x128xf32>
    tpu.vector_store %arg12[%c0, %c0_0], %0 {strides = array<i32>} : memref<8x512xf32, #tpu.memory_space<vmem>>, vector<8x128xf32>,
    %cst_1 = arith.constant 0.000000e+00 : f32
    %2 = vector.broadcast %cst_1 : f32 to vector<8x128xf32>
    %c0_2 = arith.constant 0 : index
    %c384 = arith.constant 384 : index
    %3 = vector.load %arg12[%c0_2, %c384] : memref<8x512xf32, #tpu.memory_space<vmem>>, vector<8x128xf32>
    tpu.vector_store %arg12[%c0_2, %c384], %2 {strides = array<i32>} : memref<8x512xf32, #tpu.memory_space<vmem>>, vector<8x128xf32>,
    %4 = tpu.iota {dimensions = array<i32: 1>} : vector<1x256xi32>
    %c16_i32 = arith.constant 16 : i32
    %c0_i32 = arith.constant 0 : i32
    %5 = arith.cmpi eq, %c16_i32, %c0_i32 : i32
    %c1_i32 = arith.constant 1 : i32
    %6 = arith.select %5, %c1_i32, %c16_i32 : i32
    %7 = vector.broadcast %6 : i32 to vector<1x256xi32>
    %8 = arith.remsi %4, %7 : vector<1x256xi32>
    %c0_i32_3 = arith.constant 0 : i32
    %9 = vector.broadcast %c0_i32_3 : i32 to vector<1x256xi32>
    %10 = arith.cmpi ne, %8, %9 : vector<1x256xi32>
    %c0_i32_4 = arith.constant 0 : i32
    %11 = vector.broadcast %c0_i32_4 : i32 to vector<1x256xi32>
    %12 = arith.cmpi slt, %8, %11 : vector<1x256xi32>
    %c0_i32_5 = arith.constant 0 : i32
    %13 = arith.cmpi slt, %6, %c0_i32_5 : i32
    %14 = vector.broadcast %13 : i1 to vector<1x256xi1>
    %15 = vector.broadcast %14 : vector<1x256xi1> to vector<1x256xi1>
    %16 = arith.xori %12, %15 : vector<1x256xi1>
    %17 = arith.andi %16, %10 : vector<1x256xi1>
    %18 = vector.broadcast %6 : i32 to vector<1x256xi32>
    %19 = arith.addi %8, %18 : vector<1x256xi32>
    %20 = arith.select %17, %19, %8 : vector<1x256xi1>, vector<1x256xi32>
    %c1_i32_6 = arith.constant 1 : i32
    %21 = vector.broadcast %c1_i32_6 : i32 to vector<1x256xi32>
    %22 = arith.cmpi sge, %20, %21 : vector<1x256xi32>
    %23 = vector.shape_cast %22 : vector<1x256xi1> to vector<1x256xi1>
    %24 = vector.broadcast %23 : vector<1x256xi1> to vector<8x256xi1>
    %c14_i32 = arith.constant 14 : i32
    %25 = vector.broadcast %c14_i32 : i32 to vector<1x256xi32>
    %26 = arith.cmpi sle, %20, %25 : vector<1x256xi32>
    %27 = vector.shape_cast %26 : vector<1x256xi1> to vector<1x256xi1>
    %28 = vector.broadcast %27 : vector<1x256xi1> to vector<8x256xi1>
    %c0_7 = arith.constant 0 : index
    %c0_8 = arith.constant 0 : index
    %29 = vector.load %arg2[%c0_7, %c0_8] : memref<8x4xf32, #tpu.memory_space<vmem>>, vector<8x4xf32>
    %c0_9 = arith.constant 0 : index
    %c0_10 = arith.constant 0 : index
    %30 = vector.load %arg4[%c0_9, %c0_10] : memref<8x72xf32, #tpu.memory_space<vmem>>, vector<8x72xf32>
    %c0_11 = arith.constant 0 : index
    %c0_12 = arith.constant 0 : index
    %31 = vector.load %arg6[%c0_11, %c0_12] : memref<8x72xf32, #tpu.memory_space<vmem>>, vector<8x72xf32>
    %c0_13 = arith.constant 0 : index
    %c0_14 = arith.constant 0 : index
    %32 = vector.load %arg8[%c0_13, %c0_14] : memref<4x8xf32, #tpu.memory_space<vmem>>, vector<4x8xf32>
    %c0_15 = arith.constant 0 : index
    %c0_16 = arith.constant 0 : index
    %33 = vector.load %arg3[%c0_15, %c0_16] : memref<8x1xf32, #tpu.memory_space<vmem>>, vector<8x1xf32>
    %c0_17 = arith.constant 0 : index
    %c0_18 = arith.constant 0 : index
    %34 = vector.load %arg5[%c0_17, %c0_18] : memref<8x1xf32, #tpu.memory_space<vmem>>, vector<8x1xf32>
    %c0_19 = arith.constant 0 : index
    %c0_20 = arith.constant 0 : index
    %35 = vector.load %arg7[%c0_19, %c0_20] : memref<8x1xf32, #tpu.memory_space<vmem>>, vector<8x1xf32>
    %c0_21 = arith.constant 0 : index
    %c0_22 = arith.constant 0 : index
    %36 = vector.load %arg9[%c0_21, %c0_22] : memref<4x1xf32, #tpu.memory_space<vmem>>, vector<4x1xf32>
    %c0_23 = arith.constant 0 : index
    %c0_24 = arith.constant 0 : index
    %c0_25 = arith.constant 0 : index
    %37 = vector.load %arg1[%c0_23, %c0_24, %c0_25] : memref<2x4x256xf32, #tpu.memory_space<vmem>>, vector<1x4x256xf32>
    %38 = vector.shape_cast %37 : vector<1x4x256xf32> to vector<4x256xf32>
    %cst_26 = arith.constant 5.000000e-01 : f32
    %39 = vector.broadcast %cst_26 : f32 to vector<4x256xf32>
    %40 = arith.mulf %39, %38 : vector<4x256xf32>
    %cst_27 = arith.constant 0.707106769 : f32
    %41 = vector.broadcast %cst_27 : f32 to vector<4x256xf32>
    %42 = arith.mulf %38, %41 : vector<4x256xf32>
    %43 = math.erf %42 : vector<4x256xf32>
    %cst_28 = arith.constant 1.000000e+00 : f32
    %44 = vector.broadcast %cst_28 : f32 to vector<4x256xf32>
    %45 = arith.addf %44, %43 : vector<4x256xf32>
    %46 = arith.mulf %40, %45 : vector<4x256xf32>
    %cst_29 = arith.constant dense<0.000000e+00> : vector<8x256xf32>
    %47 = tpu.matmul %29, %46, %cst_29 {dimension_numbers = #tpu.dot_dimension_numbers<[1], [0], [0], [1], [0, 0, 1, 1], [], []>} : vector<8x4xf32>, vector<4x256xf32>, vector<8x256xf32> -> vector<8x256xf32>
    %48 = vector.broadcast %33 : vector<8x1xf32> to vector<8x256xf32>
    %49 = arith.addf %47, %48 : vector<8x256xf32>
    %cst_30 = arith.constant 5.000000e-01 : f32
    %50 = vector.broadcast %cst_30 : f32 to vector<8x256xf32>
    %51 = arith.mulf %50, %49 : vector<8x256xf32>
    %cst_31 = arith.constant 0.707106769 : f32
    %52 = vector.broadcast %cst_31 : f32 to vector<8x256xf32>
    %53 = arith.mulf %49, %52 : vector<8x256xf32>
    %54 = math.erf %53 : vector<8x256xf32>
    %cst_32 = arith.constant 1.000000e+00 : f32
    %55 = vector.broadcast %cst_32 : f32 to vector<8x256xf32>
    %56 = arith.addf %55, %54 : vector<8x256xf32>
    %57 = arith.mulf %51, %56 : vector<8x256xf32>
    %c0_33 = arith.constant 0 : index
    %c128 = arith.constant 128 : index
    %58 = vector.load %arg12[%c0_33, %c128] : memref<8x512xf32, #tpu.memory_space<vmem>>, vector<8x256xf32>
    tpu.vector_store %arg12[%c0_33, %c128], %57 {strides = array<i32>} : memref<8x512xf32, #tpu.memory_space<vmem>>, vector<8x256xf32>,
    %c0_34 = arith.constant 0 : index
    %c111 = arith.constant 111 : index
    %59 = vector.load %arg12[%c0_34, %c111] : memref<8x512xf32, #tpu.memory_space<vmem>>, vector<8x256xf32>
    %cst_35 = arith.constant 0.000000e+00 : f32
    %60 = vector.broadcast %cst_35 : f32 to vector<8x256xf32>
    %61 = arith.select %24, %59, %60 : vector<8x256xi1>, vector<8x256xf32>
    %c0_36 = arith.constant 0 : index
    %c112 = arith.constant 112 : index
    %62 = vector.load %arg12[%c0_36, %c112] : memref<8x512xf32, #tpu.memory_space<vmem>>, vector<8x256xf32>
    %c0_37 = arith.constant 0 : index
    %c113 = arith.constant 113 : index
    %63 = vector.load %arg12[%c0_37, %c113] : memref<8x512xf32, #tpu.memory_space<vmem>>, vector<8x256xf32>
    %cst_38 = arith.constant 0.000000e+00 : f32
    %64 = vector.broadcast %cst_38 : f32 to vector<8x256xf32>
    %65 = arith.select %28, %63, %64 : vector<8x256xi1>, vector<8x256xf32>
    %c0_39 = arith.constant 0 : index
    %c127 = arith.constant 127 : index
    %66 = vector.load %arg12[%c0_39, %c127] : memref<8x512xf32, #tpu.memory_space<vmem>>, vector<8x256xf32>
    %cst_40 = arith.constant 0.000000e+00 : f32
    %67 = vector.broadcast %cst_40 : f32 to vector<8x256xf32>
    %68 = arith.select %24, %66, %67 : vector<8x256xi1>, vector<8x256xf32>
    %c0_41 = arith.constant 0 : index
    %c128_42 = arith.constant 128 : index
    %69 = vector.load %arg12[%c0_41, %c128_42] : memref<8x512xf32, #tpu.memory_space<vmem>>, vector<8x256xf32>
    %c0_43 = arith.constant 0 : index
    %c129 = arith.constant 129 : index
    %70 = vector.load %arg12[%c0_43, %c129] : memref<8x512xf32, #tpu.memory_space<vmem>>, vector<8x256xf32>
    %cst_44 = arith.constant 0.000000e+00 : f32
    %71 = vector.broadcast %cst_44 : f32 to vector<8x256xf32>
    %72 = arith.select %28, %70, %71 : vector<8x256xi1>, vector<8x256xf32>
    %c0_45 = arith.constant 0 : index
    %c143 = arith.constant 143 : index
    %73 = vector.load %arg12[%c0_45, %c143] : memref<8x512xf32, #tpu.memory_space<vmem>>, vector<8x256xf32>
    %cst_46 = arith.constant 0.000000e+00 : f32
    %74 = vector.broadcast %cst_46 : f32 to vector<8x256xf32>
    %75 = arith.select %24, %73, %74 : vector<8x256xi1>, vector<8x256xf32>
    %c0_47 = arith.constant 0 : index
    %c144 = arith.constant 144 : index
    %76 = vector.load %arg12[%c0_47, %c144] : memref<8x512xf32, #tpu.memory_space<vmem>>, vector<8x256xf32>
    %c0_48 = arith.constant 0 : index
    %c145 = arith.constant 145 : index
    %77 = vector.load %arg12[%c0_48, %c145] : memref<8x512xf32, #tpu.memory_space<vmem>>, vector<8x256xf32>
    %cst_49 = arith.constant 0.000000e+00 : f32
    %78 = vector.broadcast %cst_49 : f32 to vector<8x256xf32>
    %79 = arith.select %28, %77, %78 : vector<8x256xi1>, vector<8x256xf32>
    %80 = tpu.concatenate %61, %62, %65, %68, %69, %72, %75, %76, %79 in 0 : vector<8x256xf32>, vector<8x256xf32>, vector<8x256xf32>, vector<8x256xf32>, vector<8x256xf32>, vector<8x256xf32>, vector<8x256xf32>, vector<8x256xf32>, vector<8x256xf32> -> vector<72x256xf32>
    %cst_50 = arith.constant dense<0.000000e+00> : vector<8x256xf32>
    %81 = tpu.matmul %30, %80, %cst_50 {dimension_numbers = #tpu.dot_dimension_numbers<[1], [0], [0], [1], [0, 0, 1, 1], [], []>} : vector<8x72xf32>, vector<72x256xf32>, vector<8x256xf32> -> vector<8x256xf32>
    %82 = vector.broadcast %34 : vector<8x1xf32> to vector<8x256xf32>
    %83 = arith.addf %81, %82 : vector<8x256xf32>
    %cst_51 = arith.constant 5.000000e-01 : f32
    %84 = vector.broadcast %cst_51 : f32 to vector<8x256xf32>
    %85 = arith.mulf %84, %83 : vector<8x256xf32>
    %cst_52 = arith.constant 0.707106769 : f32
    %86 = vector.broadcast %cst_52 : f32 to vector<8x256xf32>
    %87 = arith.mulf %83, %86 : vector<8x256xf32>
    %88 = math.erf %87 : vector<8x256xf32>
    %cst_53 = arith.constant 1.000000e+00 : f32
    %89 = vector.broadcast %cst_53 : f32 to vector<8x256xf32>
    %90 = arith.addf %89, %88 : vector<8x256xf32>
    %91 = arith.mulf %85, %90 : vector<8x256xf32>
    %c0_54 = arith.constant 0 : index
    %c128_55 = arith.constant 128 : index
    %92 = vector.load %arg12[%c0_54, %c128_55] : memref<8x512xf32, #tpu.memory_space<vmem>>, vector<8x256xf32>
    tpu.vector_store %arg12[%c0_54, %c128_55], %91 {strides = array<i32>} : memref<8x512xf32, #tpu.memory_space<vmem>>, vector<8x256xf32>,
    %c0_56 = arith.constant 0 : index
    %c111_57 = arith.constant 111 : index
    %93 = vector.load %arg12[%c0_56, %c111_57] : memref<8x512xf32, #tpu.memory_space<vmem>>, vector<8x256xf32>
    %cst_58 = arith.constant 0.000000e+00 : f32
    %94 = vector.broadcast %cst_58 : f32 to vector<8x256xf32>
    %95 = arith.select %24, %93, %94 : vector<8x256xi1>, vector<8x256xf32>
    %c0_59 = arith.constant 0 : index
    %c112_60 = arith.constant 112 : index
    %96 = vector.load %arg12[%c0_59, %c112_60] : memref<8x512xf32, #tpu.memory_space<vmem>>, vector<8x256xf32>
    %c0_61 = arith.constant 0 : index
    %c113_62 = arith.constant 113 : index
    %97 = vector.load %arg12[%c0_61, %c113_62] : memref<8x512xf32, #tpu.memory_space<vmem>>, vector<8x256xf32>
    %cst_63 = arith.constant 0.000000e+00 : f32
    %98 = vector.broadcast %cst_63 : f32 to vector<8x256xf32>
    %99 = arith.select %28, %97, %98 : vector<8x256xi1>, vector<8x256xf32>
    %c0_64 = arith.constant 0 : index
    %c127_65 = arith.constant 127 : index
    %100 = vector.load %arg12[%c0_64, %c127_65] : memref<8x512xf32, #tpu.memory_space<vmem>>, vector<8x256xf32>
    %cst_66 = arith.constant 0.000000e+00 : f32
    %101 = vector.broadcast %cst_66 : f32 to vector<8x256xf32>
    %102 = arith.select %24, %100, %101 : vector<8x256xi1>, vector<8x256xf32>
    %c0_67 = arith.constant 0 : index
    %c128_68 = arith.constant 128 : index
    %103 = vector.load %arg12[%c0_67, %c128_68] : memref<8x512xf32, #tpu.memory_space<vmem>>, vector<8x256xf32>
    %c0_69 = arith.constant 0 : index
    %c129_70 = arith.constant 129 : index
    %104 = vector.load %arg12[%c0_69, %c129_70] : memref<8x512xf32, #tpu.memory_space<vmem>>, vector<8x256xf32>
    %cst_71 = arith.constant 0.000000e+00 : f32
    %105 = vector.broadcast %cst_71 : f32 to vector<8x256xf32>
    %106 = arith.select %28, %104, %105 : vector<8x256xi1>, vector<8x256xf32>
    %c0_72 = arith.constant 0 : index
    %c143_73 = arith.constant 143 : index
    %107 = vector.load %arg12[%c0_72, %c143_73] : memref<8x512xf32, #tpu.memory_space<vmem>>, vector<8x256xf32>
    %cst_74 = arith.constant 0.000000e+00 : f32
    %108 = vector.broadcast %cst_74 : f32 to vector<8x256xf32>
    %109 = arith.select %24, %107, %108 : vector<8x256xi1>, vector<8x256xf32>
    %c0_75 = arith.constant 0 : index
    %c144_76 = arith.constant 144 : index
    %110 = vector.load %arg12[%c0_75, %c144_76] : memref<8x512xf32, #tpu.memory_space<vmem>>, vector<8x256xf32>
    %c0_77 = arith.constant 0 : index
    %c145_78 = arith.constant 145 : index
    %111 = vector.load %arg12[%c0_77, %c145_78] : memref<8x512xf32, #tpu.memory_space<vmem>>, vector<8x256xf32>
    %cst_79 = arith.constant 0.000000e+00 : f32
    %112 = vector.broadcast %cst_79 : f32 to vector<8x256xf32>
    %113 = arith.select %28, %111, %112 : vector<8x256xi1>, vector<8x256xf32>
    %114 = tpu.concatenate %95, %96, %99, %102, %103, %106, %109, %110, %113 in 0 : vector<8x256xf32>, vector<8x256xf32>, vector<8x256xf32>, vector<8x256xf32>, vector<8x256xf32>, vector<8x256xf32>, vector<8x256xf32>, vector<8x256xf32>, vector<8x256xf32> -> vector<72x256xf32>
    %cst_80 = arith.constant dense<0.000000e+00> : vector<8x256xf32>
    %115 = tpu.matmul %31, %114, %cst_80 {dimension_numbers = #tpu.dot_dimension_numbers<[1], [0], [0], [1], [0, 0, 1, 1], [], []>} : vector<8x72xf32>, vector<72x256xf32>, vector<8x256xf32> -> vector<8x256xf32>
    %116 = vector.broadcast %35 : vector<8x1xf32> to vector<8x256xf32>
    %117 = arith.addf %115, %116 : vector<8x256xf32>
    %cst_81 = arith.constant 5.000000e-01 : f32
    %118 = vector.broadcast %cst_81 : f32 to vector<8x256xf32>
    %119 = arith.mulf %118, %117 : vector<8x256xf32>
    %cst_82 = arith.constant 0.707106769 : f32
    %120 = vector.broadcast %cst_82 : f32 to vector<8x256xf32>
    %121 = arith.mulf %117, %120 : vector<8x256xf32>
    %122 = math.erf %121 : vector<8x256xf32>
    %cst_83 = arith.constant 1.000000e+00 : f32
    %123 = vector.broadcast %cst_83 : f32 to vector<8x256xf32>
    %124 = arith.addf %123, %122 : vector<8x256xf32>
    %125 = arith.mulf %119, %124 : vector<8x256xf32>
    %cst_84 = arith.constant dense<0.000000e+00> : vector<4x256xf32>
    %126 = tpu.matmul %32, %125, %cst_84 {dimension_numbers = #tpu.dot_dimension_numbers<[1], [0], [0], [1], [0, 0, 1, 1], [], []>} : vector<4x8xf32>, vector<8x256xf32>, vector<4x256xf32> -> vector<4x256xf32>
    %127 = vector.broadcast %36 : vector<4x1xf32> to vector<4x256xf32>
    %128 = arith.addf %126, %127 : vector<4x256xf32>
    %129 = arith.addf %128, %38 : vector<4x256xf32>
    %c0_85 = arith.constant 0 : index
    %c0_86 = arith.constant 0 : index
    %130 = vector.load %arg10[%c0_85, %c0_86] : memref<256x64xf32, #tpu.memory_space<vmem>>, vector<256x64xf32>
    %cst_87 = arith.constant dense<0.000000e+00> : vector<4x64xf32>
    %131 = tpu.matmul %129, %130, %cst_87 {dimension_numbers = #tpu.dot_dimension_numbers<[1], [0], [0], [1], [0, 0, 1, 1], [], []>} : vector<4x256xf32>, vector<256x64xf32>, vector<4x64xf32> -> vector<4x64xf32>
    %c0_88 = arith.constant 0 : index
    %c0_89 = arith.constant 0 : index
    %c0_90 = arith.constant 0 : index
    %132 = vector.load %arg11[%c0_88, %c0_89, %c0_90] : memref<2x4x64xf32, #tpu.memory_space<vmem>>, vector<1x4x64xf32>
    %133 = vector.shape_cast %132 : vector<1x4x64xf32> to vector<4x64xf32>
    %134 = vector.shape_cast %131 : vector<4x64xf32> to vector<1x4x64xf32>
    tpu.vector_store %arg11[%c0_88, %c0_89, %c0_90], %134 {strides = array<i32>} : memref<2x4x64xf32, #tpu.memory_space<vmem>>, vector<1x4x64xf32>,
    %c1 = arith.constant 1 : index
    %c0_91 = arith.constant 0 : index
    %c0_92 = arith.constant 0 : index
    %135 = vector.load %arg1[%c1, %c0_91, %c0_92] : memref<2x4x256xf32, #tpu.memory_space<vmem>>, vector<1x4x256xf32>
    %136 = vector.shape_cast %135 : vector<1x4x256xf32> to vector<4x256xf32>
    %cst_93 = arith.constant 5.000000e-01 : f32
    %137 = vector.broadcast %cst_93 : f32 to vector<4x256xf32>
    %138 = arith.mulf %137, %136 : vector<4x256xf32>
    %cst_94 = arith.constant 0.707106769 : f32
    %139 = vector.broadcast %cst_94 : f32 to vector<4x256xf32>
    %140 = arith.mulf %136, %139 : vector<4x256xf32>
    %141 = math.erf %140 : vector<4x256xf32>
    %cst_95 = arith.constant 1.000000e+00 : f32
    %142 = vector.broadcast %cst_95 : f32 to vector<4x256xf32>
    %143 = arith.addf %142, %141 : vector<4x256xf32>
    %144 = arith.mulf %138, %143 : vector<4x256xf32>
    %cst_96 = arith.constant dense<0.000000e+00> : vector<8x256xf32>
    %145 = tpu.matmul %29, %144, %cst_96 {dimension_numbers = #tpu.dot_dimension_numbers<[1], [0], [0], [1], [0, 0, 1, 1], [], []>} : vector<8x4xf32>, vector<4x256xf32>, vector<8x256xf32> -> vector<8x256xf32>
    %146 = vector.broadcast %33 : vector<8x1xf32> to vector<8x256xf32>
    %147 = arith.addf %145, %146 : vector<8x256xf32>
    %cst_97 = arith.constant 5.000000e-01 : f32
    %148 = vector.broadcast %cst_97 : f32 to vector<8x256xf32>
    %149 = arith.mulf %148, %147 : vector<8x256xf32>
    %cst_98 = arith.constant 0.707106769 : f32
    %150 = vector.broadcast %cst_98 : f32 to vector<8x256xf32>
    %151 = arith.mulf %147, %150 : vector<8x256xf32>
    %152 = math.erf %151 : vector<8x256xf32>
    %cst_99 = arith.constant 1.000000e+00 : f32
    %153 = vector.broadcast %cst_99 : f32 to vector<8x256xf32>
    %154 = arith.addf %153, %152 : vector<8x256xf32>
    %155 = arith.mulf %149, %154 : vector<8x256xf32>
    %c0_100 = arith.constant 0 : index
    %c128_101 = arith.constant 128 : index
    %156 = vector.load %arg12[%c0_100, %c128_101] : memref<8x512xf32, #tpu.memory_space<vmem>>, vector<8x256xf32>
    tpu.vector_store %arg12[%c0_100, %c128_101], %155 {strides = array<i32>} : memref<8x512xf32, #tpu.memory_space<vmem>>, vector<8x256xf32>,
    %c0_102 = arith.constant 0 : index
    %c111_103 = arith.constant 111 : index
    %157 = vector.load %arg12[%c0_102, %c111_103] : memref<8x512xf32, #tpu.memory_space<vmem>>, vector<8x256xf32>
    %cst_104 = arith.constant 0.000000e+00 : f32
    %158 = vector.broadcast %cst_104 : f32 to vector<8x256xf32>
    %159 = arith.select %24, %157, %158 : vector<8x256xi1>, vector<8x256xf32>
    %c0_105 = arith.constant 0 : index
    %c112_106 = arith.constant 112 : index
    %160 = vector.load %arg12[%c0_105, %c112_106] : memref<8x512xf32, #tpu.memory_space<vmem>>, vector<8x256xf32>
    %c0_107 = arith.constant 0 : index
    %c113_108 = arith.constant 113 : index
    %161 = vector.load %arg12[%c0_107, %c113_108] : memref<8x512xf32, #tpu.memory_space<vmem>>, vector<8x256xf32>
    %cst_109 = arith.constant 0.000000e+00 : f32
    %162 = vector.broadcast %cst_109 : f32 to vector<8x256xf32>
    %163 = arith.select %28, %161, %162 : vector<8x256xi1>, vector<8x256xf32>
    %c0_110 = arith.constant 0 : index
    %c127_111 = arith.constant 127 : index
    %164 = vector.load %arg12[%c0_110, %c127_111] : memref<8x512xf32, #tpu.memory_space<vmem>>, vector<8x256xf32>
    %cst_112 = arith.constant 0.000000e+00 : f32
    %165 = vector.broadcast %cst_112 : f32 to vector<8x256xf32>
    %166 = arith.select %24, %164, %165 : vector<8x256xi1>, vector<8x256xf32>
    %c0_113 = arith.constant 0 : index
    %c128_114 = arith.constant 128 : index
    %167 = vector.load %arg12[%c0_113, %c128_114] : memref<8x512xf32, #tpu.memory_space<vmem>>, vector<8x256xf32>
    %c0_115 = arith.constant 0 : index
    %c129_116 = arith.constant 129 : index
    %168 = vector.load %arg12[%c0_115, %c129_116] : memref<8x512xf32, #tpu.memory_space<vmem>>, vector<8x256xf32>
    %cst_117 = arith.constant 0.000000e+00 : f32
    %169 = vector.broadcast %cst_117 : f32 to vector<8x256xf32>
    %170 = arith.select %28, %168, %169 : vector<8x256xi1>, vector<8x256xf32>
    %c0_118 = arith.constant 0 : index
    %c143_119 = arith.constant 143 : index
    %171 = vector.load %arg12[%c0_118, %c143_119] : memref<8x512xf32, #tpu.memory_space<vmem>>, vector<8x256xf32>
    %cst_120 = arith.constant 0.000000e+00 : f32
    %172 = vector.broadcast %cst_120 : f32 to vector<8x256xf32>
    %173 = arith.select %24, %171, %172 : vector<8x256xi1>, vector<8x256xf32>
    %c0_121 = arith.constant 0 : index
    %c144_122 = arith.constant 144 : index
    %174 = vector.load %arg12[%c0_121, %c144_122] : memref<8x512xf32, #tpu.memory_space<vmem>>, vector<8x256xf32>
    %c0_123 = arith.constant 0 : index
    %c145_124 = arith.constant 145 : index
    %175 = vector.load %arg12[%c0_123, %c145_124] : memref<8x512xf32, #tpu.memory_space<vmem>>, vector<8x256xf32>
    %cst_125 = arith.constant 0.000000e+00 : f32
    %176 = vector.broadcast %cst_125 : f32 to vector<8x256xf32>
    %177 = arith.select %28, %175, %176 : vector<8x256xi1>, vector<8x256xf32>
    %178 = tpu.concatenate %159, %160, %163, %166, %167, %170, %173, %174, %177 in 0 : vector<8x256xf32>, vector<8x256xf32>, vector<8x256xf32>, vector<8x256xf32>, vector<8x256xf32>, vector<8x256xf32>, vector<8x256xf32>, vector<8x256xf32>, vector<8x256xf32> -> vector<72x256xf32>
    %cst_126 = arith.constant dense<0.000000e+00> : vector<8x256xf32>
    %179 = tpu.matmul %30, %178, %cst_126 {dimension_numbers = #tpu.dot_dimension_numbers<[1], [0], [0], [1], [0, 0, 1, 1], [], []>} : vector<8x72xf32>, vector<72x256xf32>, vector<8x256xf32> -> vector<8x256xf32>
    %180 = vector.broadcast %34 : vector<8x1xf32> to vector<8x256xf32>
    %181 = arith.addf %179, %180 : vector<8x256xf32>
    %cst_127 = arith.constant 5.000000e-01 : f32
    %182 = vector.broadcast %cst_127 : f32 to vector<8x256xf32>
    %183 = arith.mulf %182, %181 : vector<8x256xf32>
    %cst_128 = arith.constant 0.707106769 : f32
    %184 = vector.broadcast %cst_128 : f32 to vector<8x256xf32>
    %185 = arith.mulf %181, %184 : vector<8x256xf32>
    %186 = math.erf %185 : vector<8x256xf32>
    %cst_129 = arith.constant 1.000000e+00 : f32
    %187 = vector.broadcast %cst_129 : f32 to vector<8x256xf32>
    %188 = arith.addf %187, %186 : vector<8x256xf32>
    %189 = arith.mulf %183, %188 : vector<8x256xf32>
    %c0_130 = arith.constant 0 : index
    %c128_131 = arith.constant 128 : index
    %190 = vector.load %arg12[%c0_130, %c128_131] : memref<8x512xf32, #tpu.memory_space<vmem>>, vector<8x256xf32>
    tpu.vector_store %arg12[%c0_130, %c128_131], %189 {strides = array<i32>} : memref<8x512xf32, #tpu.memory_space<vmem>>, vector<8x256xf32>,
    %c0_132 = arith.constant 0 : index
    %c111_133 = arith.constant 111 : index
    %191 = vector.load %arg12[%c0_132, %c111_133] : memref<8x512xf32, #tpu.memory_space<vmem>>, vector<8x256xf32>
    %cst_134 = arith.constant 0.000000e+00 : f32
    %192 = vector.broadcast %cst_134 : f32 to vector<8x256xf32>
    %193 = arith.select %24, %191, %192 : vector<8x256xi1>, vector<8x256xf32>
    %c0_135 = arith.constant 0 : index
    %c112_136 = arith.constant 112 : index
    %194 = vector.load %arg12[%c0_135, %c112_136] : memref<8x512xf32, #tpu.memory_space<vmem>>, vector<8x256xf32>
    %c0_137 = arith.constant 0 : index
    %c113_138 = arith.constant 113 : index
    %195 = vector.load %arg12[%c0_137, %c113_138] : memref<8x512xf32, #tpu.memory_space<vmem>>, vector<8x256xf32>
    %cst_139 = arith.constant 0.000000e+00 : f32
    %196 = vector.broadcast %cst_139 : f32 to vector<8x256xf32>
    %197 = arith.select %28, %195, %196 : vector<8x256xi1>, vector<8x256xf32>
    %c0_140 = arith.constant 0 : index
    %c127_141 = arith.constant 127 : index
    %198 = vector.load %arg12[%c0_140, %c127_141] : memref<8x512xf32, #tpu.memory_space<vmem>>, vector<8x256xf32>
    %cst_142 = arith.constant 0.000000e+00 : f32
    %199 = vector.broadcast %cst_142 : f32 to vector<8x256xf32>
    %200 = arith.select %24, %198, %199 : vector<8x256xi1>, vector<8x256xf32>
    %c0_143 = arith.constant 0 : index
    %c128_144 = arith.constant 128 : index
    %201 = vector.load %arg12[%c0_143, %c128_144] : memref<8x512xf32, #tpu.memory_space<vmem>>, vector<8x256xf32>
    %c0_145 = arith.constant 0 : index
    %c129_146 = arith.constant 129 : index
    %202 = vector.load %arg12[%c0_145, %c129_146] : memref<8x512xf32, #tpu.memory_space<vmem>>, vector<8x256xf32>
    %cst_147 = arith.constant 0.000000e+00 : f32
    %203 = vector.broadcast %cst_147 : f32 to vector<8x256xf32>
    %204 = arith.select %28, %202, %203 : vector<8x256xi1>, vector<8x256xf32>
    %c0_148 = arith.constant 0 : index
    %c143_149 = arith.constant 143 : index
    %205 = vector.load %arg12[%c0_148, %c143_149] : memref<8x512xf32, #tpu.memory_space<vmem>>, vector<8x256xf32>
    %cst_150 = arith.constant 0.000000e+00 : f32
    %206 = vector.broadcast %cst_150 : f32 to vector<8x256xf32>
    %207 = arith.select %24, %205, %206 : vector<8x256xi1>, vector<8x256xf32>
    %c0_151 = arith.constant 0 : index
    %c144_152 = arith.constant 144 : index
    %208 = vector.load %arg12[%c0_151, %c144_152] : memref<8x512xf32, #tpu.memory_space<vmem>>, vector<8x256xf32>
    %c0_153 = arith.constant 0 : index
    %c145_154 = arith.constant 145 : index
    %209 = vector.load %arg12[%c0_153, %c145_154] : memref<8x512xf32, #tpu.memory_space<vmem>>, vector<8x256xf32>
    %cst_155 = arith.constant 0.000000e+00 : f32
    %210 = vector.broadcast %cst_155 : f32 to vector<8x256xf32>
    %211 = arith.select %28, %209, %210 : vector<8x256xi1>, vector<8x256xf32>
    %212 = tpu.concatenate %193, %194, %197, %200, %201, %204, %207, %208, %211 in 0 : vector<8x256xf32>, vector<8x256xf32>, vector<8x256xf32>, vector<8x256xf32>, vector<8x256xf32>, vector<8x256xf32>, vector<8x256xf32>, vector<8x256xf32>, vector<8x256xf32> -> vector<72x256xf32>
    %cst_156 = arith.constant dense<0.000000e+00> : vector<8x256xf32>
    %213 = tpu.matmul %31, %212, %cst_156 {dimension_numbers = #tpu.dot_dimension_numbers<[1], [0], [0], [1], [0, 0, 1, 1], [], []>} : vector<8x72xf32>, vector<72x256xf32>, vector<8x256xf32> -> vector<8x256xf32>
    %214 = vector.broadcast %35 : vector<8x1xf32> to vector<8x256xf32>
    %215 = arith.addf %213, %214 : vector<8x256xf32>
    %cst_157 = arith.constant 5.000000e-01 : f32
    %216 = vector.broadcast %cst_157 : f32 to vector<8x256xf32>
    %217 = arith.mulf %216, %215 : vector<8x256xf32>
    %cst_158 = arith.constant 0.707106769 : f32
    %218 = vector.broadcast %cst_158 : f32 to vector<8x256xf32>
    %219 = arith.mulf %215, %218 : vector<8x256xf32>
    %220 = math.erf %219 : vector<8x256xf32>
    %cst_159 = arith.constant 1.000000e+00 : f32
    %221 = vector.broadcast %cst_159 : f32 to vector<8x256xf32>
    %222 = arith.addf %221, %220 : vector<8x256xf32>
    %223 = arith.mulf %217, %222 : vector<8x256xf32>
    %cst_160 = arith.constant dense<0.000000e+00> : vector<4x256xf32>
    %224 = tpu.matmul %32, %223, %cst_160 {dimension_numbers = #tpu.dot_dimension_numbers<[1], [0], [0], [1], [0, 0, 1, 1], [], []>} : vector<4x8xf32>, vector<8x256xf32>, vector<4x256xf32> -> vector<4x256xf32>
    %225 = vector.broadcast %36 : vector<4x1xf32> to vector<4x256xf32>
    %226 = arith.addf %224, %225 : vector<4x256xf32>
    %227 = arith.addf %226, %136 : vector<4x256xf32>
    %c0_161 = arith.constant 0 : index
    %c0_162 = arith.constant 0 : index
    %228 = vector.load %arg10[%c0_161, %c0_162] : memref<256x64xf32, #tpu.memory_space<vmem>>, vector<256x64xf32>
    %cst_163 = arith.constant dense<0.000000e+00> : vector<4x64xf32>
    %229 = tpu.matmul %227, %228, %cst_163 {dimension_numbers = #tpu.dot_dimension_numbers<[1], [0], [0], [1], [0, 0, 1, 1], [], []>} : vector<4x256xf32>, vector<256x64xf32>, vector<4x64xf32> -> vector<4x64xf32>
    %c1_164 = arith.constant 1 : index
    %c0_165 = arith.constant 0 : index
    %c0_166 = arith.constant 0 : index
    %230 = vector.load %arg11[%c1_164, %c0_165, %c0_166] : memref<2x4x64xf32, #tpu.memory_space<vmem>>, vector<1x4x64xf32>
    %231 = vector.shape_cast %230 : vector<1x4x64xf32> to vector<4x64xf32>
    %232 = vector.shape_cast %229 : vector<4x64xf32> to vector<1x4x64xf32>
    tpu.vector_store %arg11[%c1_164, %c0_165, %c0_166], %232 {strides = array<i32>} : memref<2x4x64xf32, #tpu.memory_space<vmem>>, vector<1x4x64xf32>,
    return
  }
  func.func @transform_0(%arg0: i32) -> (i32, i32, i32) {
    %c0_i32 = arith.constant 0 : i32
    %c0_i32_0 = arith.constant 0 : i32
    %c0_i32_1 = arith.constant 0 : i32
    return %arg0, %c0_i32, %c0_i32_0 : i32, i32, i32
  }
  func.func @transform_1(%arg0: i32) -> (i32, i32) {
    %c0_i32 = arith.constant 0 : i32
    %c0_i32_0 = arith.constant 0 : i32
    %c0_i32_1 = arith.constant 0 : i32
    return %c0_i32, %c0_i32_0 : i32, i32
  }
  func.func @transform_2(%arg0: i32) -> (i32, i32) {
    %c0_i32 = arith.constant 0 : i32
    %c0_i32_0 = arith.constant 0 : i32
    %c0_i32_1 = arith.constant 0 : i32
    return %c0_i32, %c0_i32_0 : i32, i32
  }
  func.func @transform_3(%arg0: i32) -> (i32, i32) {
    %c0_i32 = arith.constant 0 : i32
    %c0_i32_0 = arith.constant 0 : i32
    %c0_i32_1 = arith.constant 0 : i32
    return %c0_i32, %c0_i32_0 : i32, i32
  }
  func.func @transform_4(%arg0: i32) -> (i32, i32) {
    %c0_i32 = arith.constant 0 : i32
    %c0_i32_0 = arith.constant 0 : i32
    %c0_i32_1 = arith.constant 0 : i32
    return %c0_i32, %c0_i32_0 : i32, i32
  }
  func.func @transform_5(%arg0: i32) -> (i32, i32) {
    %c0_i32 = arith.constant 0 : i32
    %c0_i32_0 = arith.constant 0 : i32
    %c0_i32_1 = arith.constant 0 : i32
    return %c0_i32, %c0_i32_0 : i32, i32
  }
  func.func @transform_6(%arg0: i32) -> (i32, i32) {
    %c0_i32 = arith.constant 0 : i32
    %c0_i32_0 = arith.constant 0 : i32
    %c0_i32_1 = arith.constant 0 : i32
    return %c0_i32, %c0_i32_0 : i32, i32
  }
  func.func @transform_7(%arg0: i32) -> (i32, i32) {
    %c0_i32 = arith.constant 0 : i32
    %c0_i32_0 = arith.constant 0 : i32
    %c0_i32_1 = arith.constant 0 : i32
    return %c0_i32, %c0_i32_0 : i32, i32
  }
  func.func @transform_8(%arg0: i32) -> (i32, i32) {
    %c0_i32 = arith.constant 0 : i32
    %c0_i32_0 = arith.constant 0 : i32
    %c0_i32_1 = arith.constant 0 : i32
    return %c0_i32, %c0_i32_0 : i32, i32
  }
  func.func @transform_9(%arg0: i32) -> (i32, i32) {
    %c0_i32 = arith.constant 0 : i32
    %c0_i32_0 = arith.constant 0 : i32
    %c0_i32_1 = arith.constant 0 : i32
    return %c0_i32, %c0_i32_0 : i32, i32
  }
  func.func @transform_10(%arg0: i32) -> (i32, i32, i32) {
    %c0_i32 = arith.constant 0 : i32
    %c0_i32_0 = arith.constant 0 : i32
    %c0_i32_1 = arith.constant 0 : i32
    return %arg0, %c0_i32, %c0_i32_0 : i32, i32, i32
  }
}

</mosaic_0001>

<llo_original>
// kernel: tpu_custom_call.1
$region0: #{tpu_custom_call.1}
  #allocation0 [shape = 'u32[]', space=smem, size = 0x4, offset = 0x4, fixed_abs, tag = 'smem constant byte address 0x4 - core index']
  #allocation1 [shape = 'u32[144,128]{1,0:T(1,128)}', space=vmem, size = 0x12000, scoped, tag = 'internal scratch']
  #allocation2 [shape = 'f32[8,512]{1,0:T(8,128)}', space=vmem, size = 0x4000, scoped, tag = 'scratch operand']
  %s0 = inlined_call_operand.vmem [shape: f32[2,4,256], index: 0, kind: input, shape index: {}]
  %s1 = inlined_call_operand.vmem [shape: f32[8,4], index: 1, kind: input, shape index: {}]
  %s2 = inlined_call_operand.vmem [shape: f32[8,1], index: 2, kind: input, shape index: {}]
  %s3 = inlined_call_operand.vmem [shape: f32[8,72], index: 3, kind: input, shape index: {}]
  %s4 = inlined_call_operand.vmem [shape: f32[8,1], index: 4, kind: input, shape index: {}]
  %s5 = inlined_call_operand.vmem [shape: f32[8,72], index: 5, kind: input, shape index: {}]
  %s6 = inlined_call_operand.vmem [shape: f32[8,1], index: 6, kind: input, shape index: {}]
  %s7 = inlined_call_operand.vmem [shape: f32[4,8], index: 7, kind: input, shape index: {}]
  %s8 = inlined_call_operand.vmem [shape: f32[4,1], index: 8, kind: input, shape index: {}]
  %s9 = inlined_call_operand.vmem [shape: f32[256,64], index: 9, kind: input, shape index: {}]
  %s10 = inlined_call_operand.hbm [shape: f32[2,4,64], index: 10, kind: output, shape index: {}]
  %s11 = sld [smem:[#allocation0]]
  $region50: #{tpu_custom_call.1} parent=0
    _
  %s13 = ssub.s32 1, %s11
  %s14 = scalar_select 0, %s13, %s11
  $region1: #{tpu_custom_call.1} parent=0
    #allocation3 [shape = 'u8[4096]{0}', space=vmem, size = 0x1000, scoped, tag = 'output window, operand 0, single buffered']
    #allocation4 [shape = 's32[1]{0}', space=sflag, size = 0x4, scoped, tag = 'scoped memory for tpu_custom_call.1']
    %15 = vsyncpa [#allocation4], 0
    // Predicated region
    $region2: #{tpu_custom_call.1} parent=1 // pred_check
      _
    $region3: #{tpu_custom_call.1} parent=1 // pred_check_branch
      %17 = sbr.rel (0) target = $region5
    $region4: #{tpu_custom_call.1} parent=1 // pred_region
      _
    $region5: #{tpu_custom_call.1} parent=1 // pred_fallthru
      _
    // Predicated region
    $region6: #{tpu_custom_call.1} parent=1 // pred_check
      _
    $region7: #{tpu_custom_call.1} parent=1 // pred_check_branch
      %19 = sbr.rel (0) target = $region9
    $region8: #{tpu_custom_call.1} parent=1 // pred_region
      _
    $region9: #{tpu_custom_call.1} parent=1 // pred_fallthru
      _
    // Predicated region
    $region10: #{tpu_custom_call.1} parent=1 // pred_check
      _
    $region11: #{tpu_custom_call.1} parent=1 // pred_check_branch
      %21 = sbr.rel (0) target = $region13
    $region12: #{tpu_custom_call.1} parent=1 // pred_region
      _
    $region13: #{tpu_custom_call.1} parent=1 // pred_fallthru
      _
    // Predicated region
    $region14: #{tpu_custom_call.1} parent=1 // pred_check
      _
    $region15: #{tpu_custom_call.1} parent=1 // pred_check_branch
      %23 = sbr.rel (0) target = $region17
    $region16: #{tpu_custom_call.1} parent=1 // pred_region
      _
    $region17: #{tpu_custom_call.1} parent=1 // pred_fallthru
      _
    // Predicated region
    $region18: #{tpu_custom_call.1} parent=1 // pred_check
      _
    $region19: #{tpu_custom_call.1} parent=1 // pred_check_branch
      %25 = sbr.rel (0) target = $region21
    $region20: #{tpu_custom_call.1} parent=1 // pred_region
      _
    $region21: #{tpu_custom_call.1} parent=1 // pred_fallthru
      _
    // Predicated region
    $region22: #{tpu_custom_call.1} parent=1 // pred_check
      _
    $region23: #{tpu_custom_call.1} parent=1 // pred_check_branch
      %27 = sbr.rel (0) target = $region25
    $region24: #{tpu_custom_call.1} parent=1 // pred_region
      _
    $region25: #{tpu_custom_call.1} parent=1 // pred_fallthru
      _
    // Predicated region
    $region26: #{tpu_custom_call.1} parent=1 // pred_check
      _
    $region27: #{tpu_custom_call.1} parent=1 // pred_check_branch
      %29 = sbr.rel (0) target = $region29
    $region28: #{tpu_custom_call.1} parent=1 // pred_region
      _
    $region29: #{tpu_custom_call.1} parent=1 // pred_fallthru
      _
    // Predicated region
    $region30: #{tpu_custom_call.1} parent=1 // pred_check
      _
    $region31: #{tpu_custom_call.1} parent=1 // pred_check_branch
      %31 = sbr.rel (0) target = $region33
    $region32: #{tpu_custom_call.1} parent=1 // pred_region
      _
    $region33: #{tpu_custom_call.1} parent=1 // pred_fallthru
      _
    // Predicated region
    $region34: #{tpu_custom_call.1} parent=1 // pred_check
      _
    $region35: #{tpu_custom_call.1} parent=1 // pred_check_branch
      %33 = sbr.rel (0) target = $region37
    $region36: #{tpu_custom_call.1} parent=1 // pred_region
      _
    $region37: #{tpu_custom_call.1} parent=1 // pred_fallthru
      _
    // Predicated region
    $region38: #{tpu_custom_call.1} parent=1 // pred_check
      _
    $region39: #{tpu_custom_call.1} parent=1 // pred_check_branch
      %35 = sbr.rel (0) target = $region41
    $region40: #{tpu_custom_call.1} parent=1 // pred_region
      _
    $region41: #{tpu_custom_call.1} parent=1 // pred_fallthru
      _
    %36 = vst [vmem:[#allocation2] sm:$0xff] 0.0
    %37 = vst [vmem:[#allocation2 + $0x18] sm:$0xff] 0.0
    %v38 = vlaneseq
    %v39 = vand.u32 %v38, 127
    %v40 = vadd.s32 %v39, 128
    %vm41 = vcmp.lt.s32.totalorder %v39, 0
    %v42 = vsub.s32 0, %v39
    %v43 = vsel %vm41, %v42, %v39
    %v44 = vshrl.u32 %v43, 4
    %v45 = vand.u32 %v43, 15
    %v46 = vsub.s32 0, %v45
    %v47 = vsel %vm41, %v46, %v45
    %vm48 = vcmp.lt.s32.totalorder %v40, 0
    %v49 = vsub.s32 0, %v40
    %v50 = vsel %vm48, %v49, %v40
    %v51 = vshrl.u32 %v50, 4
    %v52 = vand.u32 %v50, 15
    %v53 = vsub.s32 0, %v52
    %v54 = vsel %vm48, %v53, %v52
    %vm55 = vcmp.ne.s32.totalorder %v47, 0
    %vm56 = vcmp.ne.s32.totalorder %v54, 0
    %vm57 = vcmp.lt.s32.totalorder %v47, 0
    %vm58 = vcmp.lt.s32.totalorder %v54, 0
    %vm59 = vmand %vm57, %vm55
    %vm60 = vmand %vm58, %vm56
    %v61 = vadd.s32 %v47, 16
    %v62 = vadd.s32 %v54, 16
    %v63 = vsel %vm59, %v61, %v47
    %v64 = vsel %vm60, %v62, %v54
    %vm65 = vcmp.ge.s32.totalorder %v63, 1
    %vm66 = vcmp.ge.s32.totalorder %v64, 1
    %v67 = vsel %vm65, 1, 0
    %v68 = vsel %vm66, 1, 0
    %vm69 = vcmp.eq.s32.totalorder %v67, 1
    %vm70 = vcmp.eq.s32.totalorder %v68, 1
    %vm71 = vcmp.le.s32.totalorder %v63, 14
    %vm72 = vcmp.le.s32.totalorder %v64, 14
    %v73 = vsel %vm71, 1, 0
    %v74 = vsel %vm72, 1, 0
    %vm75 = vcmp.eq.s32.totalorder %v73, 1
    %vm76 = vcmp.eq.s32.totalorder %v74, 1
    %v77 = vld [vmem:[%s1] sm:$0xff]
    %v78 = vld [vmem:[%s3] sm:$0xff]
    %v79 = vld [vmem:[%s5] sm:$0xff]
    %v80 = vld [vmem:[%s7] sm:$0xf]
    %v81 = vld [vmem:[%s2] sm:$0xff]
    %v82 = vld [vmem:[%s4] sm:$0xff]
    %v83 = vld [vmem:[%s6] sm:$0xff]
    %v84 = vld [vmem:[%s8] sm:$0xf]
    %v85 = vld [vmem:[%s0] sm:$0xff]
    %v86 = vmul.f32 %v85, 0.5
    %v87 = vmul.f32 %v85, 0.70710677
    %v88 = verf.f32.pop %v87
    %v89 = vadd.f32 %v88, 1.0
    %v90 = vmul.f32 %v86, %v89
    %92 = vset.pattern.permute.xlu0 0
    %93 = vperm.xlu0 %92, %v81
    %v94 = vpop.permute.xlu0 %93
    %v97 = vcombine.high %v90, %v90
    %vm98 = vcmask 31744
    %v100 = vsel %vm98, %v77, 0
    %vm102 = vcmask 1043456
    %v103 = vsel %vm102, %v90, 0
    %v105 = vsel %vm102, %v97, 0
    %107 = vmatprep.subr.mxu0 0.0
    %108 = vmatpush1.msra.mxu0 0.0
    %109 = vmatprep.subr.mxu0 0.0
    %110 = vmatpush1.msra.mxu0 0.0
    %111 = vmatprep.subr.mxu0 0.0
    %112 = vmatpush1.msra.mxu0 0.0
    %113 = vmatprep.subr.mxu0 0.0
    %114 = vmatpush1.msra.mxu0 0.0
    %115 = vmatprep.subr.mxu0 0.0
    %116 = vmatpush1.msra.mxu0 0.0
    %117 = vmatprep.subr.mxu0 0.0
    %118 = vmatpush1.msra.mxu0 0.0
    %119 = vmatprep.subr.mxu0 0.0
    %120 = vmatpush1.msra.mxu0 0.0
    %121 = vmatprep.subr.mxu0 0.0
    %122 = vmatpush1.msra.mxu0 0.0
    %123 = vmatprep.subr.mxu0 0.0
    %124 = vmatpush1.msra.mxu0 0.0
    %125 = vmatprep.subr.mxu0 0.0
    %126 = vmatpush1.msra.mxu0 0.0
    %127 = vmatprep.subr.mxu0 0.0
    %128 = vmatpush1.msra.mxu0 0.0
    %129 = vmatprep.subr.mxu0 0.0
    %130 = vmatpush1.msra.mxu0 0.0
    %131 = vmatprep.subr.mxu0 0.0
    %132 = vmatpush1.msra.mxu0 0.0
    %133 = vmatprep.subr.mxu0 0.0
    %134 = vmatpush1.msra.mxu0 0.0
    %135 = vmatprep.subr.mxu0 0.0
    %136 = vmatpush1.msra.mxu0 0.0
    %137 = vmatprep.subr.mxu0 %v105
    %138 = vmatpush1.msra.mxu0 %v103
    %139 = vmatprep.subr.mxu0 0.0
    %140 = vmatpush2.msra.mxu0 0.0
    %141 = vmatprep.subr.mxu0 0.0
    %142 = vmatpush2.msra.mxu0 0.0
    %143 = vmatprep.subr.mxu0 0.0
    %144 = vmatpush2.msra.mxu0 0.0
    %145 = vmatprep.subr.mxu0 0.0
    %146 = vmatpush2.msra.mxu0 0.0
    %147 = vmatprep.subr.mxu0 0.0
    %148 = vmatpush2.msra.mxu0 0.0
    %149 = vmatprep.subr.mxu0 0.0
    %150 = vmatpush2.msra.mxu0 0.0
    %151 = vmatprep.subr.mxu0 0.0
    %152 = vmatpush2.msra.mxu0 0.0
    %153 = vmatprep.subr.mxu0 0.0
    %154 = vmatpush2.msra.mxu0 0.0
    %155 = vmatprep.subr.mxu0 0.0
    %156 = vmatpush2.msra.mxu0 0.0
    %157 = vmatprep.subr.mxu0 0.0
    %158 = vmatpush2.msra.mxu0 0.0
    %159 = vmatprep.subr.mxu0 0.0
    %160 = vmatpush2.msra.mxu0 0.0
    %161 = vmatprep.subr.mxu0 0.0
    %162 = vmatpush2.msra.mxu0 0.0
    %163 = vmatprep.subr.mxu0 0.0
    %164 = vmatpush2.msra.mxu0 0.0
    %165 = vmatprep.subr.mxu0 0.0
    %166 = vmatpush2.msra.mxu0 0.0
    %167 = vmatprep.subr.mxu0 0.0
    %168 = vmatpush2.msra.mxu0 0.0
    %169 = vmatprep.subr.mxu0 0.0
    %170 = vmatpush2.msra.mxu0 0.0
    %171 = vmatprep.mubr.f32.mxu0 0.0
    %172 = vmatmul.mubr.f32.gmra.mxu0 %v100
    %v173 = vpop.f32.mrf.mxu0
    %v174 = vadd.f32 %v94, %v173
    %v175 = vpop.f32.mrf.mxu0
    %v176 = vadd.f32 %v94, %v175
    %177 = vdwg.mxu0
    %v178 = vmul.f32 %v174, 0.5
    %v179 = vmul.f32 %v176, 0.5
    %v180 = vmul.f32 %v174, 0.70710677
    %v181 = vmul.f32 %v176, 0.70710677
    %v182 = verf.f32.pop %v180
    %v183 = verf.f32.pop %v181
    %v184 = vadd.f32 %v182, 1.0
    %v185 = vadd.f32 %v183, 1.0
    %v186 = vmul.f32 %v178, %v184
    %v187 = vmul.f32 %v179, %v185
    %188 = vst [vmem:[#allocation2 + $0x8] sm:$0xff] %v186
    %189 = vst [vmem:[#allocation2 + $0x10] sm:$0xff] %v187
    %v190 = vld [vmem:[#allocation2] sm:$0xff]
    %v191 = vld [vmem:[#allocation2 + $0x8] sm:$0xff]
    %v192 = vld [vmem:[#allocation2 + $0x10] sm:$0xff]
    %196 = vrot.lane.b32.xlu0 %v190, 17
    %v197 = vpop.permute.xlu0 %196
    %198 = vrot.lane.b32.xlu0 %v191, 17
    %v199 = vpop.permute.xlu0 %198
    %200 = vrot.lane.b32.xlu0 %v192, 17
    %v201 = vpop.permute.xlu0 %200
    %vm202 = vcmask 138240
    %v203 = vsel %vm202, %v197, %v199
    %v204 = vsel %vm202, %v199, %v201
    %v207 = vsel %vm69, %v203, 0.0
    %v208 = vsel %vm70, %v204, 0.0
    %209 = vrot.lane.b32.xlu0 %v190, 15
    %v210 = vpop.permute.xlu0 %209
    %211 = vrot.lane.b32.xlu0 %v191, 15
    %v212 = vpop.permute.xlu0 %211
    %213 = vrot.lane.b32.xlu0 %v192, 15
    %v214 = vpop.permute.xlu0 %213
    %vm215 = vcmask 121856
    %v216 = vsel %vm215, %v210, %v212
    %v217 = vsel %vm215, %v212, %v214
    %v220 = vsel %vm75, %v216, 0.0
    %v221 = vsel %vm76, %v217, 0.0
    %222 = vrot.lane.b32.xlu0 %v190, 1
    %v223 = vpop.permute.xlu0 %222
    %224 = vrot.lane.b32.xlu0 %v191, 1
    %v225 = vpop.permute.xlu0 %224
    %226 = vrot.lane.b32.xlu0 %v192, 1
    %v227 = vpop.permute.xlu0 %226
    %vm228 = vcmask 7168
    %v229 = vsel %vm228, %v223, %v225
    %v230 = vsel %vm228, %v225, %v227
    %v233 = vsel %vm69, %v229, 0.0
    %v234 = vsel %vm70, %v230, 0.0
    %v235 = vld [vmem:[#allocation2 + $0x8] sm:$0xff]
    %v236 = vld [vmem:[#allocation2 + $0x10] sm:$0xff]
    %v237 = vld [vmem:[#allocation2 + $0x18] sm:$0xff]
    %241 = vrot.lane.b32.xlu0 %v235, 127
    %v242 = vpop.permute.xlu0 %241
    %243 = vrot.lane.b32.xlu0 %v236, 127
    %v244 = vpop.permute.xlu0 %243
    %245 = vrot.lane.b32.xlu0 %v237, 127
    %v246 = vpop.permute.xlu0 %245
    %vm247 = vcmask 1039360
    %v248 = vsel %vm247, %v242, %v244
    %v249 = vsel %vm247, %v244, %v246
    %v252 = vsel %vm75, %v248, 0.0
    %v253 = vsel %vm76, %v249, 0.0
    %254 = vrot.lane.b32.xlu0 %v235, 113
    %v255 = vpop.permute.xlu0 %254
    %256 = vrot.lane.b32.xlu0 %v236, 113
    %v257 = vpop.permute.xlu0 %256
    %258 = vrot.lane.b32.xlu0 %v237, 113
    %v259 = vpop.permute.xlu0 %258
    %vm260 = vcmask 924672
    %v261 = vsel %vm260, %v255, %v257
    %v262 = vsel %vm260, %v257, %v259
    %v265 = vsel %vm69, %v261, 0.0
    %v266 = vsel %vm70, %v262, 0.0
    %267 = vrot.lane.b32.xlu0 %v235, 111
    %v268 = vpop.permute.xlu0 %267
    %269 = vrot.lane.b32.xlu0 %v236, 111
    %v270 = vpop.permute.xlu0 %269
    %271 = vrot.lane.b32.xlu0 %v237, 111
    %v272 = vpop.permute.xlu0 %271
    %vm273 = vcmask 908288
    %v274 = vsel %vm273, %v268, %v270
    %v275 = vsel %vm273, %v270, %v272
    %v278 = vsel %vm75, %v274, 0.0
    %v279 = vsel %vm76, %v275, 0.0
    %280 = vrot.lane.b32.xlu0 %v190, 16
    %v281 = vpop.permute.xlu0 %280
    %282 = vrot.lane.b32.xlu0 %v191, 16
    %v283 = vpop.permute.xlu0 %282
    %284 = vrot.lane.b32.xlu0 %v192, 16
    %v285 = vpop.permute.xlu0 %284
    %vm286 = vcmask 130048
    %v287 = vsel %vm286, %v281, %v283
    %v288 = vsel %vm286, %v283, %v285
    %291 = vrot.lane.b32.xlu0 %v235, 112
    %v292 = vpop.permute.xlu0 %291
    %293 = vrot.lane.b32.xlu0 %v236, 112
    %v294 = vpop.permute.xlu0 %293
    %295 = vrot.lane.b32.xlu0 %v237, 112
    %v296 = vpop.permute.xlu0 %295
    %vm297 = vcmask 916480
    %v298 = vsel %vm297, %v292, %v294
    %v299 = vsel %vm297, %v294, %v296
    %303 = vset.pattern.permute.xlu0 0
    %304 = vperm.xlu0 %303, %v82
    %v305 = vpop.permute.xlu0 %304
    %vm307 = vcmask 588800
    %v309 = vsel %vm307, %v78, 0
    %311 = vmatprep.subr.mxu0 0.0
    %312 = vmatpush1.msra.mxu0 0.0
    %313 = vmatprep.subr.mxu0 0.0
    %314 = vmatpush1.msra.mxu0 0.0
    %315 = vmatprep.subr.mxu0 0.0
    %316 = vmatpush1.msra.mxu0 0.0
    %317 = vmatprep.subr.mxu0 0.0
    %318 = vmatpush1.msra.mxu0 0.0
    %319 = vmatprep.subr.mxu0 0.0
    %320 = vmatpush1.msra.mxu0 0.0
    %321 = vmatprep.subr.mxu0 0.0
    %322 = vmatpush1.msra.mxu0 0.0
    %323 = vmatprep.subr.mxu0 0.0
    %324 = vmatpush1.msra.mxu0 0.0
    %325 = vmatprep.subr.mxu0 %v279
    %326 = vmatpush1.msra.mxu0 %v278
    %327 = vmatprep.subr.mxu0 %v299
    %328 = vmatpush1.msra.mxu0 %v298
    %329 = vmatprep.subr.mxu0 %v266
    %330 = vmatpush1.msra.mxu0 %v265
    %331 = vmatprep.subr.mxu0 %v253
    %332 = vmatpush1.msra.mxu0 %v252
    %333 = vmatprep.subr.mxu0 %v192
    %334 = vmatpush1.msra.mxu0 %v191
    %335 = vmatprep.subr.mxu0 %v234
    %336 = vmatpush1.msra.mxu0 %v233
    %337 = vmatprep.subr.mxu0 %v221
    %338 = vmatpush1.msra.mxu0 %v220
    %339 = vmatprep.subr.mxu0 %v288
    %340 = vmatpush1.msra.mxu0 %v287
    %341 = vmatprep.subr.mxu0 %v208
    %342 = vmatpush1.msra.mxu0 %v207
    %343 = vmatprep.subr.mxu0 0.0
    %344 = vmatpush2.msra.mxu0 0.0
    %345 = vmatprep.subr.mxu0 0.0
    %346 = vmatpush2.msra.mxu0 0.0
    %347 = vmatprep.subr.mxu0 0.0
    %348 = vmatpush2.msra.mxu0 0.0
    %349 = vmatprep.subr.mxu0 0.0
    %350 = vmatpush2.msra.mxu0 0.0
    %351 = vmatprep.subr.mxu0 0.0
    %352 = vmatpush2.msra.mxu0 0.0
    %353 = vmatprep.subr.mxu0 0.0
    %354 = vmatpush2.msra.mxu0 0.0
    %355 = vmatprep.subr.mxu0 0.0
    %356 = vmatpush2.msra.mxu0 0.0
    %357 = vmatprep.subr.mxu0 0.0
    %358 = vmatpush2.msra.mxu0 0.0
    %359 = vmatprep.subr.mxu0 0.0
    %360 = vmatpush2.msra.mxu0 0.0
    %361 = vmatprep.subr.mxu0 0.0
    %362 = vmatpush2.msra.mxu0 0.0
    %363 = vmatprep.subr.mxu0 0.0
    %364 = vmatpush2.msra.mxu0 0.0
    %365 = vmatprep.subr.mxu0 0.0
    %366 = vmatpush2.msra.mxu0 0.0
    %367 = vmatprep.subr.mxu0 0.0
    %368 = vmatpush2.msra.mxu0 0.0
    %369 = vmatprep.subr.mxu0 0.0
    %370 = vmatpush2.msra.mxu0 0.0
    %371 = vmatprep.subr.mxu0 0.0
    %372 = vmatpush2.msra.mxu0 0.0
    %373 = vmatprep.subr.mxu0 0.0
    %374 = vmatpush2.msra.mxu0 0.0
    %375 = vmatprep.mubr.f32.mxu0 0.0
    %376 = vmatmul.mubr.f32.gmra.mxu0 %v309
    %v377 = vpop.f32.mrf.mxu0
    %v378 = vadd.f32 %v305, %v377
    %v379 = vpop.f32.mrf.mxu0
    %v380 = vadd.f32 %v305, %v379
    %381 = vdwg.mxu0
    %v382 = vmul.f32 %v378, 0.5
    %v383 = vmul.f32 %v380, 0.5
    %v384 = vmul.f32 %v378, 0.70710677
    %v385 = vmul.f32 %v380, 0.70710677
    %v386 = verf.f32.pop %v384
    %v387 = verf.f32.pop %v385
    %v388 = vadd.f32 %v386, 1.0
    %v389 = vadd.f32 %v387, 1.0
    %v390 = vmul.f32 %v382, %v388
    %v391 = vmul.f32 %v383, %v389
    %392 = vst [vmem:[#allocation2 + $0x8] sm:$0xff] %v390
    %393 = vst [vmem:[#allocation2 + $0x10] sm:$0xff] %v391
    %v394 = vld [vmem:[#allocation2] sm:$0xff]
    %v395 = vld [vmem:[#allocation2 + $0x8] sm:$0xff]
    %v396 = vld [vmem:[#allocation2 + $0x10] sm:$0xff]
    %400 = vrot.lane.b32.xlu0 %v394, 17
    %v401 = vpop.permute.xlu0 %400
    %402 = vrot.lane.b32.xlu0 %v395, 17
    %v403 = vpop.permute.xlu0 %402
    %404 = vrot.lane.b32.xlu0 %v396, 17
    %v405 = vpop.permute.xlu0 %404
    %v406 = vsel %vm202, %v401, %v403
    %v407 = vsel %vm202, %v403, %v405
    %v410 = vsel %vm69, %v406, 0.0
    %v411 = vsel %vm70, %v407, 0.0
    %412 = vrot.lane.b32.xlu0 %v394, 15
    %v413 = vpop.permute.xlu0 %412
    %414 = vrot.lane.b32.xlu0 %v395, 15
    %v415 = vpop.permute.xlu0 %414
    %416 = vrot.lane.b32.xlu0 %v396, 15
    %v417 = vpop.permute.xlu0 %416
    %v418 = vsel %vm215, %v413, %v415
    %v419 = vsel %vm215, %v415, %v417
    %v422 = vsel %vm75, %v418, 0.0
    %v423 = vsel %vm76, %v419, 0.0
    %424 = vrot.lane.b32.xlu0 %v394, 1
    %v425 = vpop.permute.xlu0 %424
    %426 = vrot.lane.b32.xlu0 %v395, 1
    %v427 = vpop.permute.xlu0 %426
    %428 = vrot.lane.b32.xlu0 %v396, 1
    %v429 = vpop.permute.xlu0 %428
    %v430 = vsel %vm228, %v425, %v427
    %v431 = vsel %vm228, %v427, %v429
    %v434 = vsel %vm69, %v430, 0.0
    %v435 = vsel %vm70, %v431, 0.0
    %v436 = vld [vmem:[#allocation2 + $0x8] sm:$0xff]
    %v437 = vld [vmem:[#allocation2 + $0x10] sm:$0xff]
    %v438 = vld [vmem:[#allocation2 + $0x18] sm:$0xff]
    %442 = vrot.lane.b32.xlu0 %v436, 127
    %v443 = vpop.permute.xlu0 %442
    %444 = vrot.lane.b32.xlu0 %v437, 127
    %v445 = vpop.permute.xlu0 %444
    %446 = vrot.lane.b32.xlu0 %v438, 127
    %v447 = vpop.permute.xlu0 %446
    %v448 = vsel %vm247, %v443, %v445
    %v449 = vsel %vm247, %v445, %v447
    %v452 = vsel %vm75, %v448, 0.0
    %v453 = vsel %vm76, %v449, 0.0
    %454 = vrot.lane.b32.xlu0 %v436, 113
    %v455 = vpop.permute.xlu0 %454
    %456 = vrot.lane.b32.xlu0 %v437, 113
    %v457 = vpop.permute.xlu0 %456
    %458 = vrot.lane.b32.xlu0 %v438, 113
    %v459 = vpop.permute.xlu0 %458
    %v460 = vsel %vm260, %v455, %v457
    %v461 = vsel %vm260, %v457, %v459
    %v464 = vsel %vm69, %v460, 0.0
    %v465 = vsel %vm70, %v461, 0.0
    %466 = vrot.lane.b32.xlu0 %v436, 111
    %v467 = vpop.permute.xlu0 %466
    %468 = vrot.lane.b32.xlu0 %v437, 111
    %v469 = vpop.permute.xlu0 %468
    %470 = vrot.lane.b32.xlu0 %v438, 111
    %v471 = vpop.permute.xlu0 %470
    %v472 = vsel %vm273, %v467, %v469
    %v473 = vsel %vm273, %v469, %v471
    %v476 = vsel %vm75, %v472, 0.0
    %v477 = vsel %vm76, %v473, 0.0
    %478 = vrot.lane.b32.xlu0 %v394, 16
    %v479 = vpop.permute.xlu0 %478
    %480 = vrot.lane.b32.xlu0 %v395, 16
    %v481 = vpop.permute.xlu0 %480
    %482 = vrot.lane.b32.xlu0 %v396, 16
    %v483 = vpop.permute.xlu0 %482
    %v484 = vsel %vm286, %v479, %v481
    %v485 = vsel %vm286, %v481, %v483
    %488 = vrot.lane.b32.xlu0 %v436, 112
    %v489 = vpop.permute.xlu0 %488
    %490 = vrot.lane.b32.xlu0 %v437, 112
    %v491 = vpop.permute.xlu0 %490
    %492 = vrot.lane.b32.xlu0 %v438, 112
    %v493 = vpop.permute.xlu0 %492
    %v494 = vsel %vm297, %v489, %v491
    %v495 = vsel %vm297, %v491, %v493
    %499 = vset.pattern.permute.xlu0 0
    %500 = vperm.xlu0 %499, %v83
    %v501 = vpop.permute.xlu0 %500
    %v504 = vsel %vm307, %v79, 0
    %506 = vmatprep.subr.mxu0 0.0
    %507 = vmatpush1.msra.mxu0 0.0
    %508 = vmatprep.subr.mxu0 0.0
    %509 = vmatpush1.msra.mxu0 0.0
    %510 = vmatprep.subr.mxu0 0.0
    %511 = vmatpush1.msra.mxu0 0.0
    %512 = vmatprep.subr.mxu0 0.0
    %513 = vmatpush1.msra.mxu0 0.0
    %514 = vmatprep.subr.mxu0 0.0
    %515 = vmatpush1.msra.mxu0 0.0
    %516 = vmatprep.subr.mxu0 0.0
    %517 = vmatpush1.msra.mxu0 0.0
    %518 = vmatprep.subr.mxu0 0.0
    %519 = vmatpush1.msra.mxu0 0.0
    %520 = vmatprep.subr.mxu0 %v477
    %521 = vmatpush1.msra.mxu0 %v476
    %522 = vmatprep.subr.mxu0 %v495
    %523 = vmatpush1.msra.mxu0 %v494
    %524 = vmatprep.subr.mxu0 %v465
    %525 = vmatpush1.msra.mxu0 %v464
    %526 = vmatprep.subr.mxu0 %v453
    %527 = vmatpush1.msra.mxu0 %v452
    %528 = vmatprep.subr.mxu0 %v396
    %529 = vmatpush1.msra.mxu0 %v395
    %530 = vmatprep.subr.mxu0 %v435
    %531 = vmatpush1.msra.mxu0 %v434
    %532 = vmatprep.subr.mxu0 %v423
    %533 = vmatpush1.msra.mxu0 %v422
    %534 = vmatprep.subr.mxu0 %v485
    %535 = vmatpush1.msra.mxu0 %v484
    %536 = vmatprep.subr.mxu0 %v411
    %537 = vmatpush1.msra.mxu0 %v410
    %538 = vmatprep.subr.mxu0 0.0
    %539 = vmatpush2.msra.mxu0 0.0
    %540 = vmatprep.subr.mxu0 0.0
    %541 = vmatpush2.msra.mxu0 0.0
    %542 = vmatprep.subr.mxu0 0.0
    %543 = vmatpush2.msra.mxu0 0.0
    %544 = vmatprep.subr.mxu0 0.0
    %545 = vmatpush2.msra.mxu0 0.0
    %546 = vmatprep.subr.mxu0 0.0
    %547 = vmatpush2.msra.mxu0 0.0
    %548 = vmatprep.subr.mxu0 0.0
    %549 = vmatpush2.msra.mxu0 0.0
    %550 = vmatprep.subr.mxu0 0.0
    %551 = vmatpush2.msra.mxu0 0.0
    %552 = vmatprep.subr.mxu0 0.0
    %553 = vmatpush2.msra.mxu0 0.0
    %554 = vmatprep.subr.mxu0 0.0
    %555 = vmatpush2.msra.mxu0 0.0
    %556 = vmatprep.subr.mxu0 0.0
    %557 = vmatpush2.msra.mxu0 0.0
    %558 = vmatprep.subr.mxu0 0.0
    %559 = vmatpush2.msra.mxu0 0.0
    %560 = vmatprep.subr.mxu0 0.0
    %561 = vmatpush2.msra.mxu0 0.0
    %562 = vmatprep.subr.mxu0 0.0
    %563 = vmatpush2.msra.mxu0 0.0
    %564 = vmatprep.subr.mxu0 0.0
    %565 = vmatpush2.msra.mxu0 0.0
    %566 = vmatprep.subr.mxu0 0.0
    %567 = vmatpush2.msra.mxu0 0.0
    %568 = vmatprep.subr.mxu0 0.0
    %569 = vmatpush2.msra.mxu0 0.0
    %570 = vmatprep.mubr.f32.mxu0 0.0
    %571 = vmatmul.mubr.f32.gmra.mxu0 %v504
    %v572 = vpop.f32.mrf.mxu0
    %v573 = vadd.f32 %v501, %v572
    %v574 = vpop.f32.mrf.mxu0
    %v575 = vadd.f32 %v501, %v574
    %576 = vdwg.mxu0
    %v577 = vmul.f32 %v573, 0.5
    %v578 = vmul.f32 %v575, 0.5
    %v579 = vmul.f32 %v573, 0.70710677
    %v580 = vmul.f32 %v575, 0.70710677
    %v581 = verf.f32.pop %v579
    %v582 = verf.f32.pop %v580
    %v583 = vadd.f32 %v581, 1.0
    %v584 = vadd.f32 %v582, 1.0
    %v585 = vmul.f32 %v577, %v583
    %v586 = vmul.f32 %v578, %v584
    %588 = vset.pattern.permute.xlu0 0
    %589 = vperm.xlu0 %588, %v84
    %v590 = vpop.permute.xlu0 %589
    %vm592 = vcmask 64512
    %v594 = vsel %vm592, %v80, 0
    %596 = vmatprep.subr.mxu0 0.0
    %597 = vmatpush1.msra.mxu0 0.0
    %598 = vmatprep.subr.mxu0 0.0
    %599 = vmatpush1.msra.mxu0 0.0
    %600 = vmatprep.subr.mxu0 0.0
    %601 = vmatpush1.msra.mxu0 0.0
    %602 = vmatprep.subr.mxu0 0.0
    %603 = vmatpush1.msra.mxu0 0.0
    %604 = vmatprep.subr.mxu0 0.0
    %605 = vmatpush1.msra.mxu0 0.0
    %606 = vmatprep.subr.mxu0 0.0
    %607 = vmatpush1.msra.mxu0 0.0
    %608 = vmatprep.subr.mxu0 0.0
    %609 = vmatpush1.msra.mxu0 0.0
    %610 = vmatprep.subr.mxu0 0.0
    %611 = vmatpush1.msra.mxu0 0.0
    %612 = vmatprep.subr.mxu0 0.0
    %613 = vmatpush1.msra.mxu0 0.0
    %614 = vmatprep.subr.mxu0 0.0
    %615 = vmatpush1.msra.mxu0 0.0
    %616 = vmatprep.subr.mxu0 0.0
    %617 = vmatpush1.msra.mxu0 0.0
    %618 = vmatprep.subr.mxu0 0.0
    %619 = vmatpush1.msra.mxu0 0.0
    %620 = vmatprep.subr.mxu0 0.0
    %621 = vmatpush1.msra.mxu0 0.0
    %622 = vmatprep.subr.mxu0 0.0
    %623 = vmatpush1.msra.mxu0 0.0
    %624 = vmatprep.subr.mxu0 0.0
    %625 = vmatpush1.msra.mxu0 0.0
    %626 = vmatprep.subr.mxu0 %v586
    %627 = vmatpush1.msra.mxu0 %v585
    %628 = vmatprep.subr.mxu0 0.0
    %629 = vmatpush2.msra.mxu0 0.0
    %630 = vmatprep.subr.mxu0 0.0
    %631 = vmatpush2.msra.mxu0 0.0
    %632 = vmatprep.subr.mxu0 0.0
    %633 = vmatpush2.msra.mxu0 0.0
    %634 = vmatprep.subr.mxu0 0.0
    %635 = vmatpush2.msra.mxu0 0.0
    %636 = vmatprep.subr.mxu0 0.0
    %637 = vmatpush2.msra.mxu0 0.0
    %638 = vmatprep.subr.mxu0 0.0
    %639 = vmatpush2.msra.mxu0 0.0
    %640 = vmatprep.subr.mxu0 0.0
    %641 = vmatpush2.msra.mxu0 0.0
    %642 = vmatprep.subr.mxu0 0.0
    %643 = vmatpush2.msra.mxu0 0.0
    %644 = vmatprep.subr.mxu0 0.0
    %645 = vmatpush2.msra.mxu0 0.0
    %646 = vmatprep.subr.mxu0 0.0
    %647 = vmatpush2.msra.mxu0 0.0
    %648 = vmatprep.subr.mxu0 0.0
    %649 = vmatpush2.msra.mxu0 0.0
    %650 = vmatprep.subr.mxu0 0.0
    %651 = vmatpush2.msra.mxu0 0.0
    %652 = vmatprep.subr.mxu0 0.0
    %653 = vmatpush2.msra.mxu0 0.0
    %654 = vmatprep.subr.mxu0 0.0
    %655 = vmatpush2.msra.mxu0 0.0
    %656 = vmatprep.subr.mxu0 0.0
    %657 = vmatpush2.msra.mxu0 0.0
    %658 = vmatprep.subr.mxu0 0.0
    %659 = vmatpush2.msra.mxu0 0.0
    %660 = vmatprep.mubr.f32.mxu0 0.0
    %661 = vmatmul.mubr.f32.gmra.mxu0 %v594
    %v662 = vpop.f32.mrf.mxu0
    %v663 = vadd.f32 %v590, %v662
    %v664 = vpop.f32.mrf.mxu0
    %v665 = vadd.f32 %v590, %v664
    %666 = vdwg.mxu0
    %v668 = vcombine.high %v85, %v85
    %v670 = vadd.f32 %v663, %v85
    %v671 = vadd.f32 %v665, %v668
    %v672 = vld [vmem:[%s9] sm:$0xff]
    %v673 = vld [vmem:[%s9 + $0x8] sm:$0xff]
    %v674 = vld [vmem:[%s9 + $0x10] sm:$0xff]
    %v675 = vld [vmem:[%s9 + $0x18] sm:$0xff]
    %v676 = vld [vmem:[%s9 + $0x20] sm:$0xff]
    %v677 = vld [vmem:[%s9 + $0x28] sm:$0xff]
    %v678 = vld [vmem:[%s9 + $0x30] sm:$0xff]
    %v679 = vld [vmem:[%s9 + $0x38] sm:$0xff]
    %v680 = vld [vmem:[%s9 + $0x40] sm:$0xff]
    %v681 = vld [vmem:[%s9 + $0x48] sm:$0xff]
    %v682 = vld [vmem:[%s9 + $0x50] sm:$0xff]
    %v683 = vld [vmem:[%s9 + $0x58] sm:$0xff]
    %v684 = vld [vmem:[%s9 + $0x60] sm:$0xff]
    %v685 = vld [vmem:[%s9 + $0x68] sm:$0xff]
    %v686 = vld [vmem:[%s9 + $0x70] sm:$0xff]
    %v687 = vld [vmem:[%s9 + $0x78] sm:$0xff]
    %v688 = vld [vmem:[%s9 + $0x80] sm:$0xff]
    %v689 = vld [vmem:[%s9 + $0x88] sm:$0xff]
    %v690 = vld [vmem:[%s9 + $0x90] sm:$0xff]
    %v691 = vld [vmem:[%s9 + $0x98] sm:$0xff]
    %v692 = vld [vmem:[%s9 + $0xa0] sm:$0xff]
    %v693 = vld [vmem:[%s9 + $0xa8] sm:$0xff]
    %v694 = vld [vmem:[%s9 + $0xb0] sm:$0xff]
    %v695 = vld [vmem:[%s9 + $0xb8] sm:$0xff]
    %v696 = vld [vmem:[%s9 + $0xc0] sm:$0xff]
    %v697 = vld [vmem:[%s9 + $0xc8] sm:$0xff]
    %v698 = vld [vmem:[%s9 + $0xd0] sm:$0xff]
    %v699 = vld [vmem:[%s9 + $0xd8] sm:$0xff]
    %v700 = vld [vmem:[%s9 + $0xe0] sm:$0xff]
    %v701 = vld [vmem:[%s9 + $0xe8] sm:$0xff]
    %v702 = vld [vmem:[%s9 + $0xf0] sm:$0xff]
    %v703 = vld [vmem:[%s9 + $0xf8] sm:$0xff]
    %704 = vmatprep.subr.mxu0 0.0
    %705 = vmatpush1.msra.mxu0 %v687
    %706 = vmatprep.subr.mxu0 0.0
    %707 = vmatpush1.msra.mxu0 %v686
    %708 = vmatprep.subr.mxu0 0.0
    %709 = vmatpush1.msra.mxu0 %v685
    %710 = vmatprep.subr.mxu0 0.0
    %711 = vmatpush1.msra.mxu0 %v684
    %712 = vmatprep.subr.mxu0 0.0
    %713 = vmatpush1.msra.mxu0 %v683
    %714 = vmatprep.subr.mxu0 0.0
    %715 = vmatpush1.msra.mxu0 %v682
    %716 = vmatprep.subr.mxu0 0.0
    %717 = vmatpush1.msra.mxu0 %v681
    %718 = vmatprep.subr.mxu0 0.0
    %719 = vmatpush1.msra.mxu0 %v680
    %720 = vmatprep.subr.mxu0 0.0
    %721 = vmatpush1.msra.mxu0 %v679
    %722 = vmatprep.subr.mxu0 0.0
    %723 = vmatpush1.msra.mxu0 %v678
    %724 = vmatprep.subr.mxu0 0.0
    %725 = vmatpush1.msra.mxu0 %v677
    %726 = vmatprep.subr.mxu0 0.0
    %727 = vmatpush1.msra.mxu0 %v676
    %728 = vmatprep.subr.mxu0 0.0
    %729 = vmatpush1.msra.mxu0 %v675
    %730 = vmatprep.subr.mxu0 0.0
    %731 = vmatpush1.msra.mxu0 %v674
    %732 = vmatprep.subr.mxu0 0.0
    %733 = vmatpush1.msra.mxu0 %v673
    %734 = vmatprep.subr.mxu0 0.0
    %735 = vmatpush1.msra.mxu0 %v672
    %736 = vmatprep.subr.mxu0 0.0
    %737 = vmatpush2.msra.mxu0 %v703
    %738 = vmatprep.subr.mxu0 0.0
    %739 = vmatpush2.msra.mxu0 %v702
    %740 = vmatprep.subr.mxu0 0.0
    %741 = vmatpush2.msra.mxu0 %v701
    %742 = vmatprep.subr.mxu0 0.0
    %743 = vmatpush2.msra.mxu0 %v700
    %744 = vmatprep.subr.mxu0 0.0
    %745 = vmatpush2.msra.mxu0 %v699
    %746 = vmatprep.subr.mxu0 0.0
    %747 = vmatpush2.msra.mxu0 %v698
    %748 = vmatprep.subr.mxu0 0.0
    %749 = vmatpush2.msra.mxu0 %v697
    %750 = vmatprep.subr.mxu0 0.0
    %751 = vmatpush2.msra.mxu0 %v696
    %752 = vmatprep.subr.mxu0 0.0
    %753 = vmatpush2.msra.mxu0 %v695
    %754 = vmatprep.subr.mxu0 0.0
    %755 = vmatpush2.msra.mxu0 %v694
    %756 = vmatprep.subr.mxu0 0.0
    %757 = vmatpush2.msra.mxu0 %v693
    %758 = vmatprep.subr.mxu0 0.0
    %759 = vmatpush2.msra.mxu0 %v692
    %760 = vmatprep.subr.mxu0 0.0
    %761 = vmatpush2.msra.mxu0 %v691
    %762 = vmatprep.subr.mxu0 0.0
    %763 = vmatpush2.msra.mxu0 %v690
    %764 = vmatprep.subr.mxu0 0.0
    %765 = vmatpush2.msra.mxu0 %v689
    %766 = vmatprep.subr.mxu0 0.0
    %767 = vmatpush2.msra.mxu0 %v688
    %768 = vmatprep.mubr.f32.mxu0 %v671
    %769 = vmatmul.mubr.f32.gmra.mxu0 %v670
    %v770 = vpop.f32.mrf.mxu0
    %v771 = vadd.f32 0.0, %v770
    %v772 = vpop.f32.mrf.mxu0
    %773 = vdwg.mxu0
    %vm774 = vcmask 519168
    %775 = vst.msk [vmem:[#allocation3] sm:$0xf] %vm774, %v771
    %s776 = scalar_lea.vmem %s0, 8
    %v777 = vld [vmem:[%s776] sm:$0xff]
    %v778 = vmul.f32 %v777, 0.5
    %v779 = vmul.f32 %v777, 0.70710677
    %v780 = verf.f32.pop %v779
    %v781 = vadd.f32 %v780, 1.0
    %v782 = vmul.f32 %v778, %v781
    %v784 = vcombine.high %v782, %v782
    %v785 = vsel %vm102, %v782, 0
    %v787 = vsel %vm102, %v784, 0
    %789 = vmatprep.subr.mxu0 0.0
    %790 = vmatpush1.msra.mxu0 0.0
    %791 = vmatprep.subr.mxu0 0.0
    %792 = vmatpush1.msra.mxu0 0.0
    %793 = vmatprep.subr.mxu0 0.0
    %794 = vmatpush1.msra.mxu0 0.0
    %795 = vmatprep.subr.mxu0 0.0
    %796 = vmatpush1.msra.mxu0 0.0
    %797 = vmatprep.subr.mxu0 0.0
    %798 = vmatpush1.msra.mxu0 0.0
    %799 = vmatprep.subr.mxu0 0.0
    %800 = vmatpush1.msra.mxu0 0.0
    %801 = vmatprep.subr.mxu0 0.0
    %802 = vmatpush1.msra.mxu0 0.0
    %803 = vmatprep.subr.mxu0 0.0
    %804 = vmatpush1.msra.mxu0 0.0
    %805 = vmatprep.subr.mxu0 0.0
    %806 = vmatpush1.msra.mxu0 0.0
    %807 = vmatprep.subr.mxu0 0.0
    %808 = vmatpush1.msra.mxu0 0.0
    %809 = vmatprep.subr.mxu0 0.0
    %810 = vmatpush1.msra.mxu0 0.0
    %811 = vmatprep.subr.mxu0 0.0
    %812 = vmatpush1.msra.mxu0 0.0
    %813 = vmatprep.subr.mxu0 0.0
    %814 = vmatpush1.msra.mxu0 0.0
    %815 = vmatprep.subr.mxu0 0.0
    %816 = vmatpush1.msra.mxu0 0.0
    %817 = vmatprep.subr.mxu0 0.0
    %818 = vmatpush1.msra.mxu0 0.0
    %819 = vmatprep.subr.mxu0 %v787
    %820 = vmatpush1.msra.mxu0 %v785
    %821 = vmatprep.subr.mxu0 0.0
    %822 = vmatpush2.msra.mxu0 0.0
    %823 = vmatprep.subr.mxu0 0.0
    %824 = vmatpush2.msra.mxu0 0.0
    %825 = vmatprep.subr.mxu0 0.0
    %826 = vmatpush2.msra.mxu0 0.0
    %827 = vmatprep.subr.mxu0 0.0
    %828 = vmatpush2.msra.mxu0 0.0
    %829 = vmatprep.subr.mxu0 0.0
    %830 = vmatpush2.msra.mxu0 0.0
    %831 = vmatprep.subr.mxu0 0.0
    %832 = vmatpush2.msra.mxu0 0.0
    %833 = vmatprep.subr.mxu0 0.0
    %834 = vmatpush2.msra.mxu0 0.0
    %835 = vmatprep.subr.mxu0 0.0
    %836 = vmatpush2.msra.mxu0 0.0
    %837 = vmatprep.subr.mxu0 0.0
    %838 = vmatpush2.msra.mxu0 0.0
    %839 = vmatprep.subr.mxu0 0.0
    %840 = vmatpush2.msra.mxu0 0.0
    %841 = vmatprep.subr.mxu0 0.0
    %842 = vmatpush2.msra.mxu0 0.0
    %843 = vmatprep.subr.mxu0 0.0
    %844 = vmatpush2.msra.mxu0 0.0
    %845 = vmatprep.subr.mxu0 0.0
    %846 = vmatpush2.msra.mxu0 0.0
    %847 = vmatprep.subr.mxu0 0.0
    %848 = vmatpush2.msra.mxu0 0.0
    %849 = vmatprep.subr.mxu0 0.0
    %850 = vmatpush2.msra.mxu0 0.0
    %851 = vmatprep.subr.mxu0 0.0
    %852 = vmatpush2.msra.mxu0 0.0
    %853 = vmatprep.mubr.f32.mxu0 0.0
    %854 = vmatmul.mubr.f32.gmra.mxu0 %v100
    %v855 = vpop.f32.mrf.mxu0
    %v856 = vadd.f32 %v94, %v855
    %v857 = vpop.f32.mrf.mxu0
    %v858 = vadd.f32 %v94, %v857
    %859 = vdwg.mxu0
    %v860 = vmul.f32 %v856, 0.5
    %v861 = vmul.f32 %v858, 0.5
    %v862 = vmul.f32 %v856, 0.70710677
    %v863 = vmul.f32 %v858, 0.70710677
    %v864 = verf.f32.pop %v862
    %v865 = verf.f32.pop %v863
    %v866 = vadd.f32 %v864, 1.0
    %v867 = vadd.f32 %v865, 1.0
    %v868 = vmul.f32 %v860, %v866
    %v869 = vmul.f32 %v861, %v867
    %870 = vst [vmem:[#allocation2 + $0x8] sm:$0xff] %v868
    %871 = vst [vmem:[#allocation2 + $0x10] sm:$0xff] %v869
    %v872 = vld [vmem:[#allocation2] sm:$0xff]
    %v873 = vld [vmem:[#allocation2 + $0x8] sm:$0xff]
    %v874 = vld [vmem:[#allocation2 + $0x10] sm:$0xff]
    %878 = vrot.lane.b32.xlu0 %v872, 17
    %v879 = vpop.permute.xlu0 %878
    %880 = vrot.lane.b32.xlu0 %v873, 17
    %v881 = vpop.permute.xlu0 %880
    %882 = vrot.lane.b32.xlu0 %v874, 17
    %v883 = vpop.permute.xlu0 %882
    %v884 = vsel %vm202, %v879, %v881
    %v885 = vsel %vm202, %v881, %v883
    %v888 = vsel %vm69, %v884, 0.0
    %v889 = vsel %vm70, %v885, 0.0
    %890 = vrot.lane.b32.xlu0 %v872, 15
    %v891 = vpop.permute.xlu0 %890
    %892 = vrot.lane.b32.xlu0 %v873, 15
    %v893 = vpop.permute.xlu0 %892
    %894 = vrot.lane.b32.xlu0 %v874, 15
    %v895 = vpop.permute.xlu0 %894
    %v896 = vsel %vm215, %v891, %v893
    %v897 = vsel %vm215, %v893, %v895
    %v900 = vsel %vm75, %v896, 0.0
    %v901 = vsel %vm76, %v897, 0.0
    %902 = vrot.lane.b32.xlu0 %v872, 1
    %v903 = vpop.permute.xlu0 %902
    %904 = vrot.lane.b32.xlu0 %v873, 1
    %v905 = vpop.permute.xlu0 %904
    %906 = vrot.lane.b32.xlu0 %v874, 1
    %v907 = vpop.permute.xlu0 %906
    %v908 = vsel %vm228, %v903, %v905
    %v909 = vsel %vm228, %v905, %v907
    %v912 = vsel %vm69, %v908, 0.0
    %v913 = vsel %vm70, %v909, 0.0
    %v914 = vld [vmem:[#allocation2 + $0x8] sm:$0xff]
    %v915 = vld [vmem:[#allocation2 + $0x10] sm:$0xff]
    %v916 = vld [vmem:[#allocation2 + $0x18] sm:$0xff]
    %920 = vrot.lane.b32.xlu0 %v914, 127
    %v921 = vpop.permute.xlu0 %920
    %922 = vrot.lane.b32.xlu0 %v915, 127
    %v923 = vpop.permute.xlu0 %922
    %924 = vrot.lane.b32.xlu0 %v916, 127
    %v925 = vpop.permute.xlu0 %924
    %v926 = vsel %vm247, %v921, %v923
    %v927 = vsel %vm247, %v923, %v925
    %v930 = vsel %vm75, %v926, 0.0
    %v931 = vsel %vm76, %v927, 0.0
    %932 = vrot.lane.b32.xlu0 %v914, 113
    %v933 = vpop.permute.xlu0 %932
    %934 = vrot.lane.b32.xlu0 %v915, 113
    %v935 = vpop.permute.xlu0 %934
    %936 = vrot.lane.b32.xlu0 %v916, 113
    %v937 = vpop.permute.xlu0 %936
    %v938 = vsel %vm260, %v933, %v935
    %v939 = vsel %vm260, %v935, %v937
    %v942 = vsel %vm69, %v938, 0.0
    %v943 = vsel %vm70, %v939, 0.0
    %944 = vrot.lane.b32.xlu0 %v914, 111
    %v945 = vpop.permute.xlu0 %944
    %946 = vrot.lane.b32.xlu0 %v915, 111
    %v947 = vpop.permute.xlu0 %946
    %948 = vrot.lane.b32.xlu0 %v916, 111
    %v949 = vpop.permute.xlu0 %948
    %v950 = vsel %vm273, %v945, %v947
    %v951 = vsel %vm273, %v947, %v949
    %v954 = vsel %vm75, %v950, 0.0
    %v955 = vsel %vm76, %v951, 0.0
    %956 = vrot.lane.b32.xlu0 %v872, 16
    %v957 = vpop.permute.xlu0 %956
    %958 = vrot.lane.b32.xlu0 %v873, 16
    %v959 = vpop.permute.xlu0 %958
    %960 = vrot.lane.b32.xlu0 %v874, 16
    %v961 = vpop.permute.xlu0 %960
    %v962 = vsel %vm286, %v957, %v959
    %v963 = vsel %vm286, %v959, %v961
    %966 = vrot.lane.b32.xlu0 %v914, 112
    %v967 = vpop.permute.xlu0 %966
    %968 = vrot.lane.b32.xlu0 %v915, 112
    %v969 = vpop.permute.xlu0 %968
    %970 = vrot.lane.b32.xlu0 %v916, 112
    %v971 = vpop.permute.xlu0 %970
    %v972 = vsel %vm297, %v967, %v969
    %v973 = vsel %vm297, %v969, %v971
    %976 = vmatprep.subr.mxu0 0.0
    %977 = vmatpush1.msra.mxu0 0.0
    %978 = vmatprep.subr.mxu0 0.0
    %979 = vmatpush1.msra.mxu0 0.0
    %980 = vmatprep.subr.mxu0 0.0
    %981 = vmatpush1.msra.mxu0 0.0
    %982 = vmatprep.subr.mxu0 0.0
    %983 = vmatpush1.msra.mxu0 0.0
    %984 = vmatprep.subr.mxu0 0.0
    %985 = vmatpush1.msra.mxu0 0.0
    %986 = vmatprep.subr.mxu0 0.0
    %987 = vmatpush1.msra.mxu0 0.0
    %988 = vmatprep.subr.mxu0 0.0
    %989 = vmatpush1.msra.mxu0 0.0
    %990 = vmatprep.subr.mxu0 %v955
    %991 = vmatpush1.msra.mxu0 %v954
    %992 = vmatprep.subr.mxu0 %v973
    %993 = vmatpush1.msra.mxu0 %v972
    %994 = vmatprep.subr.mxu0 %v943
    %995 = vmatpush1.msra.mxu0 %v942
    %996 = vmatprep.subr.mxu0 %v931
    %997 = vmatpush1.msra.mxu0 %v930
    %998 = vmatprep.subr.mxu0 %v874
    %999 = vmatpush1.msra.mxu0 %v873
    %1000 = vmatprep.subr.mxu0 %v913
    %1001 = vmatpush1.msra.mxu0 %v912
    %1002 = vmatprep.subr.mxu0 %v901
    %1003 = vmatpush1.msra.mxu0 %v900
    %1004 = vmatprep.subr.mxu0 %v963
    %1005 = vmatpush1.msra.mxu0 %v962
    %1006 = vmatprep.subr.mxu0 %v889
    %1007 = vmatpush1.msra.mxu0 %v888
    %1008 = vmatprep.subr.mxu0 0.0
    %1009 = vmatpush2.msra.mxu0 0.0
    %1010 = vmatprep.subr.mxu0 0.0
    %1011 = vmatpush2.msra.mxu0 0.0
    %1012 = vmatprep.subr.mxu0 0.0
    %1013 = vmatpush2.msra.mxu0 0.0
    %1014 = vmatprep.subr.mxu0 0.0
    %1015 = vmatpush2.msra.mxu0 0.0
    %1016 = vmatprep.subr.mxu0 0.0
    %1017 = vmatpush2.msra.mxu0 0.0
    %1018 = vmatprep.subr.mxu0 0.0
    %1019 = vmatpush2.msra.mxu0 0.0
    %1020 = vmatprep.subr.mxu0 0.0
    %1021 = vmatpush2.msra.mxu0 0.0
    %1022 = vmatprep.subr.mxu0 0.0
    %1023 = vmatpush2.msra.mxu0 0.0
    %1024 = vmatprep.subr.mxu0 0.0
    %1025 = vmatpush2.msra.mxu0 0.0
    %1026 = vmatprep.subr.mxu0 0.0
    %1027 = vmatpush2.msra.mxu0 0.0
    %1028 = vmatprep.subr.mxu0 0.0
    %1029 = vmatpush2.msra.mxu0 0.0
    %1030 = vmatprep.subr.mxu0 0.0
    %1031 = vmatpush2.msra.mxu0 0.0
    %1032 = vmatprep.subr.mxu0 0.0
    %1033 = vmatpush2.msra.mxu0 0.0
    %1034 = vmatprep.subr.mxu0 0.0
    %1035 = vmatpush2.msra.mxu0 0.0
    %1036 = vmatprep.subr.mxu0 0.0
    %1037 = vmatpush2.msra.mxu0 0.0
    %1038 = vmatprep.subr.mxu0 0.0
    %1039 = vmatpush2.msra.mxu0 0.0
    %1040 = vmatprep.mubr.f32.mxu0 0.0
    %1041 = vmatmul.mubr.f32.gmra.mxu0 %v309
    %v1042 = vpop.f32.mrf.mxu0
    %v1043 = vadd.f32 %v305, %v1042
    %v1044 = vpop.f32.mrf.mxu0
    %v1045 = vadd.f32 %v305, %v1044
    %1046 = vdwg.mxu0
    %v1047 = vmul.f32 %v1043, 0.5
    %v1048 = vmul.f32 %v1045, 0.5
    %v1049 = vmul.f32 %v1043, 0.70710677
    %v1050 = vmul.f32 %v1045, 0.70710677
    %v1051 = verf.f32.pop %v1049
    %v1052 = verf.f32.pop %v1050
    %v1053 = vadd.f32 %v1051, 1.0
    %v1054 = vadd.f32 %v1052, 1.0
    %v1055 = vmul.f32 %v1047, %v1053
    %v1056 = vmul.f32 %v1048, %v1054
    %1057 = vst [vmem:[#allocation2 + $0x8] sm:$0xff] %v1055
    %1058 = vst [vmem:[#allocation2 + $0x10] sm:$0xff] %v1056
    %v1059 = vld [vmem:[#allocation2] sm:$0xff]
    %v1060 = vld [vmem:[#allocation2 + $0x8] sm:$0xff]
    %v1061 = vld [vmem:[#allocation2 + $0x10] sm:$0xff]
    %1065 = vrot.lane.b32.xlu0 %v1059, 17
    %v1066 = vpop.permute.xlu0 %1065
    %1067 = vrot.lane.b32.xlu0 %v1060, 17
    %v1068 = vpop.permute.xlu0 %1067
    %1069 = vrot.lane.b32.xlu0 %v1061, 17
    %v1070 = vpop.permute.xlu0 %1069
    %v1071 = vsel %vm202, %v1066, %v1068
    %v1072 = vsel %vm202, %v1068, %v1070
    %v1075 = vsel %vm69, %v1071, 0.0
    %v1076 = vsel %vm70, %v1072, 0.0
    %1077 = vrot.lane.b32.xlu0 %v1059, 15
    %v1078 = vpop.permute.xlu0 %1077
    %1079 = vrot.lane.b32.xlu0 %v1060, 15
    %v1080 = vpop.permute.xlu0 %1079
    %1081 = vrot.lane.b32.xlu0 %v1061, 15
    %v1082 = vpop.permute.xlu0 %1081
    %v1083 = vsel %vm215, %v1078, %v1080
    %v1084 = vsel %vm215, %v1080, %v1082
    %v1087 = vsel %vm75, %v1083, 0.0
    %v1088 = vsel %vm76, %v1084, 0.0
    %1089 = vrot.lane.b32.xlu0 %v1059, 1
    %v1090 = vpop.permute.xlu0 %1089
    %1091 = vrot.lane.b32.xlu0 %v1060, 1
    %v1092 = vpop.permute.xlu0 %1091
    %1093 = vrot.lane.b32.xlu0 %v1061, 1
    %v1094 = vpop.permute.xlu0 %1093
    %v1095 = vsel %vm228, %v1090, %v1092
    %v1096 = vsel %vm228, %v1092, %v1094
    %v1099 = vsel %vm69, %v1095, 0.0
    %v1100 = vsel %vm70, %v1096, 0.0
    %v1101 = vld [vmem:[#allocation2 + $0x8] sm:$0xff]
    %v1102 = vld [vmem:[#allocation2 + $0x10] sm:$0xff]
    %v1103 = vld [vmem:[#allocation2 + $0x18] sm:$0xff]
    %1107 = vrot.lane.b32.xlu0 %v1101, 127
    %v1108 = vpop.permute.xlu0 %1107
    %1109 = vrot.lane.b32.xlu0 %v1102, 127
    %v1110 = vpop.permute.xlu0 %1109
    %1111 = vrot.lane.b32.xlu0 %v1103, 127
    %v1112 = vpop.permute.xlu0 %1111
    %v1113 = vsel %vm247, %v1108, %v1110
    %v1114 = vsel %vm247, %v1110, %v1112
    %v1117 = vsel %vm75, %v1113, 0.0
    %v1118 = vsel %vm76, %v1114, 0.0
    %1119 = vrot.lane.b32.xlu0 %v1101, 113
    %v1120 = vpop.permute.xlu0 %1119
    %1121 = vrot.lane.b32.xlu0 %v1102, 113
    %v1122 = vpop.permute.xlu0 %1121
    %1123 = vrot.lane.b32.xlu0 %v1103, 113
    %v1124 = vpop.permute.xlu0 %1123
    %v1125 = vsel %vm260, %v1120, %v1122
    %v1126 = vsel %vm260, %v1122, %v1124
    %v1129 = vsel %vm69, %v1125, 0.0
    %v1130 = vsel %vm70, %v1126, 0.0
    %1131 = vrot.lane.b32.xlu0 %v1101, 111
    %v1132 = vpop.permute.xlu0 %1131
    %1133 = vrot.lane.b32.xlu0 %v1102, 111
    %v1134 = vpop.permute.xlu0 %1133
    %1135 = vrot.lane.b32.xlu0 %v1103, 111
    %v1136 = vpop.permute.xlu0 %1135
    %v1137 = vsel %vm273, %v1132, %v1134
    %v1138 = vsel %vm273, %v1134, %v1136
    %v1141 = vsel %vm75, %v1137, 0.0
    %v1142 = vsel %vm76, %v1138, 0.0
    %1143 = vrot.lane.b32.xlu0 %v1059, 16
    %v1144 = vpop.permute.xlu0 %1143
    %1145 = vrot.lane.b32.xlu0 %v1060, 16
    %v1146 = vpop.permute.xlu0 %1145
    %1147 = vrot.lane.b32.xlu0 %v1061, 16
    %v1148 = vpop.permute.xlu0 %1147
    %v1149 = vsel %vm286, %v1144, %v1146
    %v1150 = vsel %vm286, %v1146, %v1148
    %1153 = vrot.lane.b32.xlu0 %v1101, 112
    %v1154 = vpop.permute.xlu0 %1153
    %1155 = vrot.lane.b32.xlu0 %v1102, 112
    %v1156 = vpop.permute.xlu0 %1155
    %1157 = vrot.lane.b32.xlu0 %v1103, 112
    %v1158 = vpop.permute.xlu0 %1157
    %v1159 = vsel %vm297, %v1154, %v1156
    %v1160 = vsel %vm297, %v1156, %v1158
    %1163 = vmatprep.subr.mxu0 0.0
    %1164 = vmatpush1.msra.mxu0 0.0
    %1165 = vmatprep.subr.mxu0 0.0
    %1166 = vmatpush1.msra.mxu0 0.0
    %1167 = vmatprep.subr.mxu0 0.0
    %1168 = vmatpush1.msra.mxu0 0.0
    %1169 = vmatprep.subr.mxu0 0.0
    %1170 = vmatpush1.msra.mxu0 0.0
    %1171 = vmatprep.subr.mxu0 0.0
    %1172 = vmatpush1.msra.mxu0 0.0
    %1173 = vmatprep.subr.mxu0 0.0
    %1174 = vmatpush1.msra.mxu0 0.0
    %1175 = vmatprep.subr.mxu0 0.0
    %1176 = vmatpush1.msra.mxu0 0.0
    %1177 = vmatprep.subr.mxu0 %v1142
    %1178 = vmatpush1.msra.mxu0 %v1141
    %1179 = vmatprep.subr.mxu0 %v1160
    %1180 = vmatpush1.msra.mxu0 %v1159
    %1181 = vmatprep.subr.mxu0 %v1130
    %1182 = vmatpush1.msra.mxu0 %v1129
    %1183 = vmatprep.subr.mxu0 %v1118
    %1184 = vmatpush1.msra.mxu0 %v1117
    %1185 = vmatprep.subr.mxu0 %v1061
    %1186 = vmatpush1.msra.mxu0 %v1060
    %1187 = vmatprep.subr.mxu0 %v1100
    %1188 = vmatpush1.msra.mxu0 %v1099
    %1189 = vmatprep.subr.mxu0 %v1088
    %1190 = vmatpush1.msra.mxu0 %v1087
    %1191 = vmatprep.subr.mxu0 %v1150
    %1192 = vmatpush1.msra.mxu0 %v1149
    %1193 = vmatprep.subr.mxu0 %v1076
    %1194 = vmatpush1.msra.mxu0 %v1075
    %1195 = vmatprep.subr.mxu0 0.0
    %1196 = vmatpush2.msra.mxu0 0.0
    %1197 = vmatprep.subr.mxu0 0.0
    %1198 = vmatpush2.msra.mxu0 0.0
    %1199 = vmatprep.subr.mxu0 0.0
    %1200 = vmatpush2.msra.mxu0 0.0
    %1201 = vmatprep.subr.mxu0 0.0
    %1202 = vmatpush2.msra.mxu0 0.0
    %1203 = vmatprep.subr.mxu0 0.0
    %1204 = vmatpush2.msra.mxu0 0.0
    %1205 = vmatprep.subr.mxu0 0.0
    %1206 = vmatpush2.msra.mxu0 0.0
    %1207 = vmatprep.subr.mxu0 0.0
    %1208 = vmatpush2.msra.mxu0 0.0
    %1209 = vmatprep.subr.mxu0 0.0
    %1210 = vmatpush2.msra.mxu0 0.0
    %1211 = vmatprep.subr.mxu0 0.0
    %1212 = vmatpush2.msra.mxu0 0.0
    %1213 = vmatprep.subr.mxu0 0.0
    %1214 = vmatpush2.msra.mxu0 0.0
    %1215 = vmatprep.subr.mxu0 0.0
    %1216 = vmatpush2.msra.mxu0 0.0
    %1217 = vmatprep.subr.mxu0 0.0
    %1218 = vmatpush2.msra.mxu0 0.0
    %1219 = vmatprep.subr.mxu0 0.0
    %1220 = vmatpush2.msra.mxu0 0.0
    %1221 = vmatprep.subr.mxu0 0.0
    %1222 = vmatpush2.msra.mxu0 0.0
    %1223 = vmatprep.subr.mxu0 0.0
    %1224 = vmatpush2.msra.mxu0 0.0
    %1225 = vmatprep.subr.mxu0 0.0
    %1226 = vmatpush2.msra.mxu0 0.0
    %1227 = vmatprep.mubr.f32.mxu0 0.0
    %1228 = vmatmul.mubr.f32.gmra.mxu0 %v504
    %v1229 = vpop.f32.mrf.mxu0
    %v1230 = vadd.f32 %v501, %v1229
    %v1231 = vpop.f32.mrf.mxu0
    %v1232 = vadd.f32 %v501, %v1231
    %1233 = vdwg.mxu0
    %v1234 = vmul.f32 %v1230, 0.5
    %v1235 = vmul.f32 %v1232, 0.5
    %v1236 = vmul.f32 %v1230, 0.70710677
    %v1237 = vmul.f32 %v1232, 0.70710677
    %v1238 = verf.f32.pop %v1236
    %v1239 = verf.f32.pop %v1237
    %v1240 = vadd.f32 %v1238, 1.0
    %v1241 = vadd.f32 %v1239, 1.0
    %v1242 = vmul.f32 %v1234, %v1240
    %v1243 = vmul.f32 %v1235, %v1241
    %1244 = vmatprep.subr.mxu0 0.0
    %1245 = vmatpush1.msra.mxu0 0.0
    %1246 = vmatprep.subr.mxu0 0.0
    %1247 = vmatpush1.msra.mxu0 0.0
    %1248 = vmatprep.subr.mxu0 0.0
    %1249 = vmatpush1.msra.mxu0 0.0
    %1250 = vmatprep.subr.mxu0 0.0
    %1251 = vmatpush1.msra.mxu0 0.0
    %1252 = vmatprep.subr.mxu0 0.0
    %1253 = vmatpush1.msra.mxu0 0.0
    %1254 = vmatprep.subr.mxu0 0.0
    %1255 = vmatpush1.msra.mxu0 0.0
    %1256 = vmatprep.subr.mxu0 0.0
    %1257 = vmatpush1.msra.mxu0 0.0
    %1258 = vmatprep.subr.mxu0 0.0
    %1259 = vmatpush1.msra.mxu0 0.0
    %1260 = vmatprep.subr.mxu0 0.0
    %1261 = vmatpush1.msra.mxu0 0.0
    %1262 = vmatprep.subr.mxu0 0.0
    %1263 = vmatpush1.msra.mxu0 0.0
    %1264 = vmatprep.subr.mxu0 0.0
    %1265 = vmatpush1.msra.mxu0 0.0
    %1266 = vmatprep.subr.mxu0 0.0
    %1267 = vmatpush1.msra.mxu0 0.0
    %1268 = vmatprep.subr.mxu0 0.0
    %1269 = vmatpush1.msra.mxu0 0.0
    %1270 = vmatprep.subr.mxu0 0.0
    %1271 = vmatpush1.msra.mxu0 0.0
    %1272 = vmatprep.subr.mxu0 0.0
    %1273 = vmatpush1.msra.mxu0 0.0
    %1274 = vmatprep.subr.mxu0 %v1243
    %1275 = vmatpush1.msra.mxu0 %v1242
    %1276 = vmatprep.subr.mxu0 0.0
    %1277 = vmatpush2.msra.mxu0 0.0
    %1278 = vmatprep.subr.mxu0 0.0
    %1279 = vmatpush2.msra.mxu0 0.0
    %1280 = vmatprep.subr.mxu0 0.0
    %1281 = vmatpush2.msra.mxu0 0.0
    %1282 = vmatprep.subr.mxu0 0.0
    %1283 = vmatpush2.msra.mxu0 0.0
    %1284 = vmatprep.subr.mxu0 0.0
    %1285 = vmatpush2.msra.mxu0 0.0
    %1286 = vmatprep.subr.mxu0 0.0
    %1287 = vmatpush2.msra.mxu0 0.0
    %1288 = vmatprep.subr.mxu0 0.0
    %1289 = vmatpush2.msra.mxu0 0.0
    %1290 = vmatprep.subr.mxu0 0.0
    %1291 = vmatpush2.msra.mxu0 0.0
    %1292 = vmatprep.subr.mxu0 0.0
    %1293 = vmatpush2.msra.mxu0 0.0
    %1294 = vmatprep.subr.mxu0 0.0
    %1295 = vmatpush2.msra.mxu0 0.0
    %1296 = vmatprep.subr.mxu0 0.0
    %1297 = vmatpush2.msra.mxu0 0.0
    %1298 = vmatprep.subr.mxu0 0.0
    %1299 = vmatpush2.msra.mxu0 0.0
    %1300 = vmatprep.subr.mxu0 0.0
    %1301 = vmatpush2.msra.mxu0 0.0
    %1302 = vmatprep.subr.mxu0 0.0
    %1303 = vmatpush2.msra.mxu0 0.0
    %1304 = vmatprep.subr.mxu0 0.0
    %1305 = vmatpush2.msra.mxu0 0.0
    %1306 = vmatprep.subr.mxu0 0.0
    %1307 = vmatpush2.msra.mxu0 0.0
    %1308 = vmatprep.mubr.f32.mxu0 0.0
    %1309 = vmatmul.mubr.f32.gmra.mxu0 %v594
    %v1310 = vpop.f32.mrf.mxu0
    %v1311 = vadd.f32 %v590, %v1310
    %v1312 = vpop.f32.mrf.mxu0
    %v1313 = vadd.f32 %v590, %v1312
    %1314 = vdwg.mxu0
    %v1316 = vcombine.high %v777, %v777
    %v1318 = vadd.f32 %v1311, %v777
    %v1319 = vadd.f32 %v1313, %v1316
    %v1320 = vld [vmem:[%s9] sm:$0xff]
    %v1321 = vld [vmem:[%s9 + $0x8] sm:$0xff]
    %v1322 = vld [vmem:[%s9 + $0x10] sm:$0xff]
    %v1323 = vld [vmem:[%s9 + $0x18] sm:$0xff]
    %v1324 = vld [vmem:[%s9 + $0x20] sm:$0xff]
    %v1325 = vld [vmem:[%s9 + $0x28] sm:$0xff]
    %v1326 = vld [vmem:[%s9 + $0x30] sm:$0xff]
    %v1327 = vld [vmem:[%s9 + $0x38] sm:$0xff]
    %v1328 = vld [vmem:[%s9 + $0x40] sm:$0xff]
    %v1329 = vld [vmem:[%s9 + $0x48] sm:$0xff]
    %v1330 = vld [vmem:[%s9 + $0x50] sm:$0xff]
    %v1331 = vld [vmem:[%s9 + $0x58] sm:$0xff]
    %v1332 = vld [vmem:[%s9 + $0x60] sm:$0xff]
    %v1333 = vld [vmem:[%s9 + $0x68] sm:$0xff]
    %v1334 = vld [vmem:[%s9 + $0x70] sm:$0xff]
    %v1335 = vld [vmem:[%s9 + $0x78] sm:$0xff]
    %v1336 = vld [vmem:[%s9 + $0x80] sm:$0xff]
    %v1337 = vld [vmem:[%s9 + $0x88] sm:$0xff]
    %v1338 = vld [vmem:[%s9 + $0x90] sm:$0xff]
    %v1339 = vld [vmem:[%s9 + $0x98] sm:$0xff]
    %v1340 = vld [vmem:[%s9 + $0xa0] sm:$0xff]
    %v1341 = vld [vmem:[%s9 + $0xa8] sm:$0xff]
    %v1342 = vld [vmem:[%s9 + $0xb0] sm:$0xff]
    %v1343 = vld [vmem:[%s9 + $0xb8] sm:$0xff]
    %v1344 = vld [vmem:[%s9 + $0xc0] sm:$0xff]
    %v1345 = vld [vmem:[%s9 + $0xc8] sm:$0xff]
    %v1346 = vld [vmem:[%s9 + $0xd0] sm:$0xff]
    %v1347 = vld [vmem:[%s9 + $0xd8] sm:$0xff]
    %v1348 = vld [vmem:[%s9 + $0xe0] sm:$0xff]
    %v1349 = vld [vmem:[%s9 + $0xe8] sm:$0xff]
    %v1350 = vld [vmem:[%s9 + $0xf0] sm:$0xff]
    %v1351 = vld [vmem:[%s9 + $0xf8] sm:$0xff]
    %1352 = vmatprep.subr.mxu0 0.0
    %1353 = vmatpush1.msra.mxu0 %v1335
    %1354 = vmatprep.subr.mxu0 0.0
    %1355 = vmatpush1.msra.mxu0 %v1334
    %1356 = vmatprep.subr.mxu0 0.0
    %1357 = vmatpush1.msra.mxu0 %v1333
    %1358 = vmatprep.subr.mxu0 0.0
    %1359 = vmatpush1.msra.mxu0 %v1332
    %1360 = vmatprep.subr.mxu0 0.0
    %1361 = vmatpush1.msra.mxu0 %v1331
    %1362 = vmatprep.subr.mxu0 0.0
    %1363 = vmatpush1.msra.mxu0 %v1330
    %1364 = vmatprep.subr.mxu0 0.0
    %1365 = vmatpush1.msra.mxu0 %v1329
    %1366 = vmatprep.subr.mxu0 0.0
    %1367 = vmatpush1.msra.mxu0 %v1328
    %1368 = vmatprep.subr.mxu0 0.0
    %1369 = vmatpush1.msra.mxu0 %v1327
    %1370 = vmatprep.subr.mxu0 0.0
    %1371 = vmatpush1.msra.mxu0 %v1326
    %1372 = vmatprep.subr.mxu0 0.0
    %1373 = vmatpush1.msra.mxu0 %v1325
    %1374 = vmatprep.subr.mxu0 0.0
    %1375 = vmatpush1.msra.mxu0 %v1324
    %1376 = vmatprep.subr.mxu0 0.0
    %1377 = vmatpush1.msra.mxu0 %v1323
    %1378 = vmatprep.subr.mxu0 0.0
    %1379 = vmatpush1.msra.mxu0 %v1322
    %1380 = vmatprep.subr.mxu0 0.0
    %1381 = vmatpush1.msra.mxu0 %v1321
    %1382 = vmatprep.subr.mxu0 0.0
    %1383 = vmatpush1.msra.mxu0 %v1320
    %1384 = vmatprep.subr.mxu0 0.0
    %1385 = vmatpush2.msra.mxu0 %v1351
    %1386 = vmatprep.subr.mxu0 0.0
    %1387 = vmatpush2.msra.mxu0 %v1350
    %1388 = vmatprep.subr.mxu0 0.0
    %1389 = vmatpush2.msra.mxu0 %v1349
    %1390 = vmatprep.subr.mxu0 0.0
    %1391 = vmatpush2.msra.mxu0 %v1348
    %1392 = vmatprep.subr.mxu0 0.0
    %1393 = vmatpush2.msra.mxu0 %v1347
    %1394 = vmatprep.subr.mxu0 0.0
    %1395 = vmatpush2.msra.mxu0 %v1346
    %1396 = vmatprep.subr.mxu0 0.0
    %1397 = vmatpush2.msra.mxu0 %v1345
    %1398 = vmatprep.subr.mxu0 0.0
    %1399 = vmatpush2.msra.mxu0 %v1344
    %1400 = vmatprep.subr.mxu0 0.0
    %1401 = vmatpush2.msra.mxu0 %v1343
    %1402 = vmatprep.subr.mxu0 0.0
    %1403 = vmatpush2.msra.mxu0 %v1342
    %1404 = vmatprep.subr.mxu0 0.0
    %1405 = vmatpush2.msra.mxu0 %v1341
    %1406 = vmatprep.subr.mxu0 0.0
    %1407 = vmatpush2.msra.mxu0 %v1340
    %1408 = vmatprep.subr.mxu0 0.0
    %1409 = vmatpush2.msra.mxu0 %v1339
    %1410 = vmatprep.subr.mxu0 0.0
    %1411 = vmatpush2.msra.mxu0 %v1338
    %1412 = vmatprep.subr.mxu0 0.0
    %1413 = vmatpush2.msra.mxu0 %v1337
    %1414 = vmatprep.subr.mxu0 0.0
    %1415 = vmatpush2.msra.mxu0 %v1336
    %1416 = vmatprep.mubr.f32.mxu0 %v1319
    %1417 = vmatmul.mubr.f32.gmra.mxu0 %v1318
    %v1418 = vpop.f32.mrf.mxu0
    %v1419 = vadd.f32 0.0, %v1418
    %v1420 = vpop.f32.mrf.mxu0
    %1421 = vdwg.mxu0
    %s1422 = scalar_lea.vmem [#allocation3], 4
    %1423 = vst.msk [vmem:[%s1422] sm:$0xf] %vm774, %v1419
    // Predicated region
    $region42: #{tpu_custom_call.1} parent=1 // pred_check
      _
    $region43: #{tpu_custom_call.1} parent=1 // pred_check_branch
      %1425 = sbr.rel (0) target = $region45
    $region44: #{tpu_custom_call.1} parent=1 // pred_region
      %s1427 = ssub.s32 128, 128
      %1428 = vsyncadd [#allocation4], %s1427
      %s1429 = sshll.u32 [#allocation3], 4
      %s1430 = int_to_ptr.vmem [resolvable:$true] %s1429
      %1435 = dma.vmem_to_hbm [thread:$0]  %s1430, 128, %s10, [#allocation4], 64, 64, 4
    $region45: #{tpu_custom_call.1} parent=1 // pred_fallthru
      _
    // Predicated region
    $region46: #{tpu_custom_call.1} parent=1 // pred_check
      _
    $region47: #{tpu_custom_call.1} parent=1 // pred_check_branch
      %1437 = sbr.rel (0) target = $region49
    $region48: #{tpu_custom_call.1} parent=1 // pred_region
      %1438 = dma.done [#allocation4], 128
    $region49: #{tpu_custom_call.1} parent=1 // pred_fallthru
      _
    %1439 = vsyncpa [#allocation4], 1

</llo_original>
